<compile_context>
chip_gen: v7x
topology: tpu7x:2x2x1
jax: 0.10.0
libtpu: 0.0.40
codegen_flags: <defaults>
</compile_context>

<pallas_src>
import jax
import jax.numpy as jnp
from jax.experimental import pallas as pl
from jax.experimental.pallas import tpu as pltpu


def _alignment_kernel(img_ref, tab_ref,
                      iw1_ref, ib1_ref, iw2_ref, ib2_ref,
                      tw1_ref, tb1_ref, tw2_ref, tb2_ref,
                      o_ref):
    """Fused forward: o[:, :L] = img_proj(img), o[:, L:] = tab_proj(tab).

    Matmuls run bf16 x bf16 -> f32 on the MXU; bias add / ReLU in f32 on the VPU.
    """
    # --- image path: Linear(img_dim, 512) -> ReLU -> Linear(512, latent) ---
    img = img_ref[...].astype(jnp.bfloat16)
    h = jnp.dot(img, iw1_ref[...], preferred_element_type=jnp.float32) + ib1_ref[...]
    h = jnp.maximum(h, 0.0).astype(jnp.bfloat16)
    img_lat = jnp.dot(h, iw2_ref[...], preferred_element_type=jnp.float32) + ib2_ref[...]

    # --- tabular path: Linear(tab_dim, 256) -> ReLU -> Linear(256, latent) ---
    tab = tab_ref[...].astype(jnp.bfloat16)
    g = jnp.dot(tab, tw1_ref[...], preferred_element_type=jnp.float32) + tb1_ref[...]
    g = jnp.maximum(g, 0.0).astype(jnp.bfloat16)
    tab_lat = jnp.dot(g, tw2_ref[...], preferred_element_type=jnp.float32) + tb2_ref[...]

    # Lane-dense store: (B, 2*latent) == (B, 128) when latent=64 -> unmasked vst.
    o_ref[...] = jnp.concatenate([img_lat, tab_lat], axis=-1).astype(o_ref.dtype)


def alignment_forward(img_feat, tab_feat,
                      img_w1, img_b1, img_w2, img_b2,
                      tab_w1, tab_b1, tab_w2, tab_b2):
    """Run the fused AlignmentModel forward pass. Returns (img_lat, tab_lat)."""
    B = img_feat.shape[0]
    latent = img_w2.shape[1]

    def full(shape):
        # grid=() -> one resident block covering the whole array.
        return pl.BlockSpec(shape, lambda: (0,) * len(shape))

    args = (img_feat, tab_feat,
            img_w1, img_b1, img_w2, img_b2,
            tab_w1, tab_b1, tab_w2, tab_b2)

    out = pl.pallas_call(
        _alignment_kernel,
        out_shape=jax.ShapeDtypeStruct((B, 2 * latent), jnp.float32),
        grid=(),
        in_specs=[full(a.shape) for a in args],
        out_specs=full((B, 2 * latent)),
    )(*args)

    return out[:, :latent], out[:, latent:]


class AlignmentModelPallas:
    """JAX/Pallas port of the PyTorch AlignmentModel forward pass."""

    def __init__(self, key, img_dim=1280, tab_dim=128, latent_dim=64):
        ks = jax.random.split(key, 8)

        def init_linear(kw, kb, fan_in, fan_out):
            # Kaiming-uniform-ish init matching nn.Linear bounds.
            bound = 1.0 / jnp.sqrt(fan_in)
            w = jax.random.uniform(kw, (fan_in, fan_out), jnp.float32, -bound, bound)
            b = jax.random.uniform(kb, (1, fan_out), jnp.float32, -bound, bound)
            # Weights in bf16 (halves the dominant HBM DMA); biases stay f32.
            return w.astype(jnp.bfloat16), b

        # img_proj: Linear(img_dim, 512) -> ReLU -> Linear(512, latent_dim)
        self.img_w1, self.img_b1 = init_linear(ks[0], ks[1], img_dim, 512)
        self.img_w2, self.img_b2 = init_linear(ks[2], ks[3], 512, latent_dim)
        # tab_proj: Linear(tab_dim, 256) -> ReLU -> Linear(256, latent_dim)
        self.tab_w1, self.tab_b1 = init_linear(ks[4], ks[5], tab_dim, 256)
        self.tab_w2, self.tab_b2 = init_linear(ks[6], ks[7], 256, latent_dim)

    def __call__(self, img_feat, tab_feat):
        return alignment_forward(
            img_feat, tab_feat,
            self.img_w1, self.img_b1, self.img_w2, self.img_b2,
            self.tab_w1, self.tab_b1, self.tab_w2, self.tab_b2)


def _reference(model, img_feat, tab_feat):
    """Plain-JAX reference mirroring the kernel's bf16-matmul / f32-accumulate math."""
    def mlp(x, w1, b1, w2, b2):
        h = jnp.dot(x.astype(jnp.bfloat16), w1,
                    preferred_element_type=jnp.float32) + b1
        h = jnp.maximum(h, 0.0).astype(jnp.bfloat16)
        return jnp.dot(h, w2, preferred_element_type=jnp.float32) + b2

    img = mlp(img_feat, model.img_w1, model.img_b1, model.img_w2, model.img_b2)
    tab = mlp(tab_feat, model.tab_w1, model.tab_b1, model.tab_w2, model.tab_b2)
    return img, tab


if __name__ == "__main__":
    key = jax.random.PRNGKey(0)
    k_model, k_img, k_tab = jax.random.split(key, 3)

    B = 8
    IMG_DIM, TAB_DIM, LATENT = 1280, 128, 64

    model = AlignmentModelPallas(k_model, img_dim=IMG_DIM, tab_dim=TAB_DIM,
                                 latent_dim=LATENT)

    img_feat = jax.random.normal(k_img, (B, IMG_DIM), jnp.float32)
    tab_feat = jax.random.normal(k_tab, (B, TAB_DIM), jnp.float32)

    img_lat, tab_lat = model(img_feat, tab_feat)
    jax.block_until_ready((img_lat, tab_lat))

    ref_img, ref_tab = _reference(model, img_feat, tab_feat)
    assert img_lat.shape == (B, LATENT) and tab_lat.shape == (B, LATENT)
    # bf16 matmuls -> loosened tolerance vs. the previous pure-f32 check.
    assert jnp.allclose(img_lat, ref_img, atol=1e-2, rtol=1e-2)
    assert jnp.allclose(tab_lat, ref_tab, atol=1e-2, rtol=1e-2)

    print("KERNEL_OK")
</pallas_src>

<mosaic_0001>
module attributes {stable_mosaic.version = 11 : i64} {
  func.func @_alignment_kernel(%arg0: memref<8x1280xf32, #tpu.memory_space<vmem>>, %arg1: memref<8x128xf32, #tpu.memory_space<vmem>>, %arg2: memref<1280x512xbf16, #tpu.memory_space<vmem>>, %arg3: memref<1x512xf32, #tpu.memory_space<vmem>>, %arg4: memref<512x64xbf16, #tpu.memory_space<vmem>>, %arg5: memref<1x64xf32, #tpu.memory_space<vmem>>, %arg6: memref<128x256xbf16, #tpu.memory_space<vmem>>, %arg7: memref<1x256xf32, #tpu.memory_space<vmem>>, %arg8: memref<256x64xbf16, #tpu.memory_space<vmem>>, %arg9: memref<1x64xf32, #tpu.memory_space<vmem>>, %arg10: memref<8x128xf32, #tpu.memory_space<vmem>>) attributes {dimension_semantics = [], scalar_prefetch = 0 : i64, scratch_operands = 0 : i64, tpu.core_type = #tpu.core_type<tc>} {
    %c0 = arith.constant 0 : index
    %c0_0 = arith.constant 0 : index
    %0 = vector.load %arg0[%c0, %c0_0] : memref<8x1280xf32, #tpu.memory_space<vmem>>, vector<8x1280xf32>
    %1 = arith.truncf %0 : vector<8x1280xf32> to vector<8x1280xbf16>
    %c0_1 = arith.constant 0 : index
    %c0_2 = arith.constant 0 : index
    %2 = vector.load %arg2[%c0_1, %c0_2] : memref<1280x512xbf16, #tpu.memory_space<vmem>>, vector<1280x512xbf16>
    %cst = arith.constant dense<0.000000e+00> : vector<8x512xf32>
    %3 = tpu.matmul %1, %2, %cst {dimension_numbers = #tpu.dot_dimension_numbers<[1], [0], [0], [1], [0, 0, 1, 1], [], []>} : vector<8x1280xbf16>, vector<1280x512xbf16>, vector<8x512xf32> -> vector<8x512xf32>
    %c0_3 = arith.constant 0 : index
    %c0_4 = arith.constant 0 : index
    %4 = vector.load %arg3[%c0_3, %c0_4] : memref<1x512xf32, #tpu.memory_space<vmem>>, vector<1x512xf32>
    %5 = vector.broadcast %4 : vector<1x512xf32> to vector<8x512xf32>
    %6 = arith.addf %3, %5 : vector<8x512xf32>
    %cst_5 = arith.constant 0.000000e+00 : f32
    %7 = vector.broadcast %cst_5 : f32 to vector<8x512xf32>
    %8 = arith.maximumf %6, %7 : vector<8x512xf32>
    %9 = arith.truncf %8 : vector<8x512xf32> to vector<8x512xbf16>
    %c0_6 = arith.constant 0 : index
    %c0_7 = arith.constant 0 : index
    %10 = vector.load %arg4[%c0_6, %c0_7] : memref<512x64xbf16, #tpu.memory_space<vmem>>, vector<512x64xbf16>
    %cst_8 = arith.constant dense<0.000000e+00> : vector<8x64xf32>
    %11 = tpu.matmul %9, %10, %cst_8 {dimension_numbers = #tpu.dot_dimension_numbers<[1], [0], [0], [1], [0, 0, 1, 1], [], []>} : vector<8x512xbf16>, vector<512x64xbf16>, vector<8x64xf32> -> vector<8x64xf32>
    %c0_9 = arith.constant 0 : index
    %c0_10 = arith.constant 0 : index
    %12 = vector.load %arg5[%c0_9, %c0_10] : memref<1x64xf32, #tpu.memory_space<vmem>>, vector<1x64xf32>
    %13 = vector.broadcast %12 : vector<1x64xf32> to vector<8x64xf32>
    %14 = arith.addf %11, %13 : vector<8x64xf32>
    %c0_11 = arith.constant 0 : index
    %c0_12 = arith.constant 0 : index
    %15 = vector.load %arg1[%c0_11, %c0_12] : memref<8x128xf32, #tpu.memory_space<vmem>>, vector<8x128xf32>
    %16 = arith.truncf %15 : vector<8x128xf32> to vector<8x128xbf16>
    %c0_13 = arith.constant 0 : index
    %c0_14 = arith.constant 0 : index
    %17 = vector.load %arg6[%c0_13, %c0_14] : memref<128x256xbf16, #tpu.memory_space<vmem>>, vector<128x256xbf16>
    %cst_15 = arith.constant dense<0.000000e+00> : vector<8x256xf32>
    %18 = tpu.matmul %16, %17, %cst_15 {dimension_numbers = #tpu.dot_dimension_numbers<[1], [0], [0], [1], [0, 0, 1, 1], [], []>} : vector<8x128xbf16>, vector<128x256xbf16>, vector<8x256xf32> -> vector<8x256xf32>
    %c0_16 = arith.constant 0 : index
    %c0_17 = arith.constant 0 : index
    %19 = vector.load %arg7[%c0_16, %c0_17] : memref<1x256xf32, #tpu.memory_space<vmem>>, vector<1x256xf32>
    %20 = vector.broadcast %19 : vector<1x256xf32> to vector<8x256xf32>
    %21 = arith.addf %18, %20 : vector<8x256xf32>
    %cst_18 = arith.constant 0.000000e+00 : f32
    %22 = vector.broadcast %cst_18 : f32 to vector<8x256xf32>
    %23 = arith.maximumf %21, %22 : vector<8x256xf32>
    %24 = arith.truncf %23 : vector<8x256xf32> to vector<8x256xbf16>
    %c0_19 = arith.constant 0 : index
    %c0_20 = arith.constant 0 : index
    %25 = vector.load %arg8[%c0_19, %c0_20] : memref<256x64xbf16, #tpu.memory_space<vmem>>, vector<256x64xbf16>
    %cst_21 = arith.constant dense<0.000000e+00> : vector<8x64xf32>
    %26 = tpu.matmul %24, %25, %cst_21 {dimension_numbers = #tpu.dot_dimension_numbers<[1], [0], [0], [1], [0, 0, 1, 1], [], []>} : vector<8x256xbf16>, vector<256x64xbf16>, vector<8x64xf32> -> vector<8x64xf32>
    %c0_22 = arith.constant 0 : index
    %c0_23 = arith.constant 0 : index
    %27 = vector.load %arg9[%c0_22, %c0_23] : memref<1x64xf32, #tpu.memory_space<vmem>>, vector<1x64xf32>
    %28 = vector.broadcast %27 : vector<1x64xf32> to vector<8x64xf32>
    %29 = arith.addf %26, %28 : vector<8x64xf32>
    %30 = tpu.concatenate %14, %29 in 1 : vector<8x64xf32>, vector<8x64xf32> -> vector<8x128xf32>
    %c0_24 = arith.constant 0 : index
    %c0_25 = arith.constant 0 : index
    %31 = vector.load %arg10[%c0_24, %c0_25] : memref<8x128xf32, #tpu.memory_space<vmem>>, vector<8x128xf32>
    tpu.vector_store %arg10[%c0_24, %c0_25], %30 {strides = array<i32>} : memref<8x128xf32, #tpu.memory_space<vmem>>, vector<8x128xf32>,
    return
  }
}

</mosaic_0001>

<llo_original>
// kernel: tpu_custom_call.1
$region0: #{tpu_custom_call.1}
  #allocation0 [shape = 'u32[]', space=smem, size = 0x4, offset = 0x4, fixed_abs, tag = 'smem constant byte address 0x4 - core index']
  #allocation1 [shape = 'u32[144,128]{1,0:T(1,128)}', space=vmem, size = 0x12000, scoped, tag = 'internal scratch']
  %s0 = inlined_call_operand.hbm [shape: f32[8,1280], index: 0, kind: input, shape index: {}]
  %s1 = inlined_call_operand.hbm [shape: f32[8,128], index: 1, kind: input, shape index: {}]
  %s2 = inlined_call_operand.hbm [shape: bf16[1280,512], index: 2, kind: input, shape index: {}]
  %s3 = inlined_call_operand.hbm [shape: f32[1,512], index: 3, kind: input, shape index: {}]
  %s4 = inlined_call_operand.vmem [shape: bf16[512,64], index: 4, kind: input, shape index: {}]
  %s5 = inlined_call_operand.hbm [shape: f32[1,64], index: 5, kind: input, shape index: {}]
  %s6 = inlined_call_operand.hbm [shape: bf16[128,256], index: 6, kind: input, shape index: {}]
  %s7 = inlined_call_operand.hbm [shape: f32[1,256], index: 7, kind: input, shape index: {}]
  %s8 = inlined_call_operand.vmem [shape: bf16[256,64], index: 8, kind: input, shape index: {}]
  %s9 = inlined_call_operand.hbm [shape: f32[1,64], index: 9, kind: input, shape index: {}]
  %s10 = inlined_call_operand.hbm [shape: f32[8,128], index: 10, kind: output, shape index: {}]
  %s11 = sld [smem:[#allocation0]]
  $region82: #{tpu_custom_call.1} parent=0
    _
  %s13 = ssub.s32 1, %s11
  %s14 = scalar_select 0, %s13, %s11
  $region1: #{tpu_custom_call.1} parent=0
    #allocation2 [shape = 'u8[40960]{0}', space=vmem, size = 0xa000, scoped, tag = 'input window, operand 0, single buffered']
    #allocation3 [shape = 's32[1]{0}', space=sflag, size = 0x4, scoped, tag = 'scoped memory for tpu_custom_call.1']
    #allocation4 [shape = 's32[1]{0}', space=sflag, size = 0x4, scoped, tag = 'scoped memory for tpu_custom_call.1']
    #allocation5 [shape = 'u8[4096]{0}', space=vmem, size = 0x1000, scoped, tag = 'input window, operand 1, single buffered']
    #allocation6 [shape = 's32[1]{0}', space=sflag, size = 0x4, scoped, tag = 'scoped memory for tpu_custom_call.1']
    #allocation7 [shape = 'u8[1310720]{0}', space=vmem, size = 0x140000, scoped, tag = 'input window, operand 2, single buffered']
    #allocation8 [shape = 'u8[2048]{0}', space=vmem, size = 0x800, scoped, tag = 'input window, operand 3, single buffered']
    #allocation9 [shape = 's32[1]{0}', space=sflag, size = 0x4, scoped, tag = 'scoped memory for tpu_custom_call.1']
    #allocation10 [shape = 'u8[512]{0}', space=vmem, size = 0x400, scoped, tag = 'input window, operand 5, single buffered']
    #allocation11 [shape = 'u8[65536]{0}', space=vmem, size = 0x10000, scoped, tag = 'input window, operand 6, single buffered']
    #allocation12 [shape = 's32[1]{0}', space=sflag, size = 0x4, scoped, tag = 'scoped memory for tpu_custom_call.1']
    #allocation13 [shape = 'u8[1024]{0}', space=vmem, size = 0x400, scoped, tag = 'input window, operand 7, single buffered']
    #allocation14 [shape = 'u8[512]{0}', space=vmem, size = 0x400, scoped, tag = 'input window, operand 9, single buffered']
    #allocation15 [shape = 's32[1]{0}', space=sflag, size = 0x4, scoped, tag = 'scoped memory for tpu_custom_call.1']
    #allocation16 [shape = 'u8[4096]{0}', space=vmem, size = 0x1000, scoped, tag = 'output window, operand 0, single buffered']
    %15 = vsyncpa [#allocation3], 0
    %16 = vsyncpa [#allocation6], 0
    %17 = vsyncpa [#allocation9], 0
    %18 = vsyncpa [#allocation12], 0
    %19 = vsyncpa [#allocation15], 0
    %20 = vsyncpa [#allocation4], 0
    // Predicated region
    $region2: #{tpu_custom_call.1} parent=1 // pred_check
      _
    $region3: #{tpu_custom_call.1} parent=1 // pred_check_branch
      %22 = sbr.rel (0) target = $region5
    $region4: #{tpu_custom_call.1} parent=1 // pred_region
      %s24 = ssub.s32 1280, 1280
      %25 = vsyncadd [#allocation3], %s24
      %s27 = sshll.u32 [#allocation2], 4
      %s28 = int_to_ptr.vmem [resolvable:$true] %s27
      %30 = dma.hbm_to_vmem [thread:$0]  %s0, 1280, %s28, [#allocation3]
    $region5: #{tpu_custom_call.1} parent=1 // pred_fallthru
      _
    // Predicated region
    $region6: #{tpu_custom_call.1} parent=1 // pred_check
      _
    $region7: #{tpu_custom_call.1} parent=1 // pred_check_branch
      %32 = sbr.rel (0) target = $region9
    $region8: #{tpu_custom_call.1} parent=1 // pred_region
      %s34 = ssub.s32 128, 128
      %35 = vsyncadd [#allocation6], %s34
      %s37 = sshll.u32 [#allocation5], 4
      %s38 = int_to_ptr.vmem [resolvable:$true] %s37
      %40 = dma.hbm_to_vmem [thread:$0]  %s1, 128, %s38, [#allocation6]
    $region9: #{tpu_custom_call.1} parent=1 // pred_fallthru
      _
    // Predicated region
    $region10: #{tpu_custom_call.1} parent=1 // pred_check
      _
    $region11: #{tpu_custom_call.1} parent=1 // pred_check_branch
      %42 = sbr.rel (0) target = $region13
    $region12: #{tpu_custom_call.1} parent=1 // pred_region
      %s44 = ssub.s32 40960, 40960
      %45 = vsyncadd [#allocation6], %s44
      %s46 = sshll.u32 [#allocation7], 4
      %s47 = int_to_ptr.vmem [resolvable:$true] %s46
      %52 = dma.hbm_to_vmem [thread:$0]  %s2, 40960, %s47, [#allocation6], 256, 256, 16
    $region13: #{tpu_custom_call.1} parent=1 // pred_fallthru
      _
    // Predicated region
    $region14: #{tpu_custom_call.1} parent=1 // pred_check
      _
    $region15: #{tpu_custom_call.1} parent=1 // pred_check_branch
      %54 = sbr.rel (0) target = $region17
    $region16: #{tpu_custom_call.1} parent=1 // pred_region
      %s56 = ssub.s32 64, 64
      %57 = vsyncadd [#allocation9], %s56
      %s59 = sshll.u32 [#allocation8], 4
      %s60 = int_to_ptr.vmem [resolvable:$true] %s59
      %62 = dma.hbm_to_vmem [thread:$0]  %s3, 64, %s60, [#allocation9]
    $region17: #{tpu_custom_call.1} parent=1 // pred_fallthru
      _
    // Predicated region
    $region18: #{tpu_custom_call.1} parent=1 // pred_check
      _
    $region19: #{tpu_custom_call.1} parent=1 // pred_check_branch
      %64 = sbr.rel (0) target = $region21
    $region20: #{tpu_custom_call.1} parent=1 // pred_region
      _
    $region21: #{tpu_custom_call.1} parent=1 // pred_fallthru
      _
    // Predicated region
    $region22: #{tpu_custom_call.1} parent=1 // pred_check
      _
    $region23: #{tpu_custom_call.1} parent=1 // pred_check_branch
      %66 = sbr.rel (0) target = $region25
    $region24: #{tpu_custom_call.1} parent=1 // pred_region
      %s68 = ssub.s32 16, 16
      %69 = vsyncadd [#allocation9], %s68
      %s71 = sshll.u32 [#allocation10], 4
      %s72 = int_to_ptr.vmem [resolvable:$true] %s71
      %74 = dma.hbm_to_vmem [thread:$0]  %s5, 16, %s72, [#allocation9]
    $region25: #{tpu_custom_call.1} parent=1 // pred_fallthru
      _
    // Predicated region
    $region26: #{tpu_custom_call.1} parent=1 // pred_check
      _
    $region27: #{tpu_custom_call.1} parent=1 // pred_check_branch
      %76 = sbr.rel (0) target = $region29
    $region28: #{tpu_custom_call.1} parent=1 // pred_region
      %s78 = ssub.s32 2048, 2048
      %79 = vsyncadd [#allocation12], %s78
      %s80 = sshll.u32 [#allocation11], 4
      %s81 = int_to_ptr.vmem [resolvable:$true] %s80
      %86 = dma.hbm_to_vmem [thread:$0]  %s6, 2048, %s81, [#allocation12], 128, 128, 8
    $region29: #{tpu_custom_call.1} parent=1 // pred_fallthru
      _
    // Predicated region
    $region30: #{tpu_custom_call.1} parent=1 // pred_check
      _
    $region31: #{tpu_custom_call.1} parent=1 // pred_check_branch
      %88 = sbr.rel (0) target = $region33
    $region32: #{tpu_custom_call.1} parent=1 // pred_region
      %s90 = ssub.s32 32, 32
      %91 = vsyncadd [#allocation12], %s90
      %s93 = sshll.u32 [#allocation13], 4
      %s94 = int_to_ptr.vmem [resolvable:$true] %s93
      %96 = dma.hbm_to_vmem [thread:$0]  %s7, 32, %s94, [#allocation12]
    $region33: #{tpu_custom_call.1} parent=1 // pred_fallthru
      _
    // Predicated region
    $region34: #{tpu_custom_call.1} parent=1 // pred_check
      _
    $region35: #{tpu_custom_call.1} parent=1 // pred_check_branch
      %98 = sbr.rel (0) target = $region37
    $region36: #{tpu_custom_call.1} parent=1 // pred_region
      _
    $region37: #{tpu_custom_call.1} parent=1 // pred_fallthru
      _
    // Predicated region
    $region38: #{tpu_custom_call.1} parent=1 // pred_check
      _
    $region39: #{tpu_custom_call.1} parent=1 // pred_check_branch
      %100 = sbr.rel (0) target = $region41
    $region40: #{tpu_custom_call.1} parent=1 // pred_region
      %s102 = ssub.s32 16, 16
      %103 = vsyncadd [#allocation15], %s102
      %s105 = sshll.u32 [#allocation14], 4
      %s106 = int_to_ptr.vmem [resolvable:$true] %s105
      %108 = dma.hbm_to_vmem [thread:$0]  %s9, 16, %s106, [#allocation15]
    $region41: #{tpu_custom_call.1} parent=1 // pred_fallthru
      _
    // Predicated region
    $region42: #{tpu_custom_call.1} parent=1 // pred_check
      _
    $region43: #{tpu_custom_call.1} parent=1 // pred_check_branch
      %110 = sbr.rel (0) target = $region45
    $region44: #{tpu_custom_call.1} parent=1 // pred_region
      %111 = dma.done [#allocation3], 1280
    $region45: #{tpu_custom_call.1} parent=1 // pred_fallthru
      _
    // Predicated region
    $region46: #{tpu_custom_call.1} parent=1 // pred_check
      _
    $region47: #{tpu_custom_call.1} parent=1 // pred_check_branch
      %113 = sbr.rel (0) target = $region49
    $region48: #{tpu_custom_call.1} parent=1 // pred_region
      %114 = dma.done [#allocation6], 128
    $region49: #{tpu_custom_call.1} parent=1 // pred_fallthru
      _
    // Predicated region
    $region50: #{tpu_custom_call.1} parent=1 // pred_check
      _
    $region51: #{tpu_custom_call.1} parent=1 // pred_check_branch
      %116 = sbr.rel (0) target = $region53
    $region52: #{tpu_custom_call.1} parent=1 // pred_region
      %117 = dma.done [#allocation6], 40960
    $region53: #{tpu_custom_call.1} parent=1 // pred_fallthru
      _
    // Predicated region
    $region54: #{tpu_custom_call.1} parent=1 // pred_check
      _
    $region55: #{tpu_custom_call.1} parent=1 // pred_check_branch
      %119 = sbr.rel (0) target = $region57
    $region56: #{tpu_custom_call.1} parent=1 // pred_region
      %120 = dma.done [#allocation9], 64
    $region57: #{tpu_custom_call.1} parent=1 // pred_fallthru
      _
    // Predicated region
    $region58: #{tpu_custom_call.1} parent=1 // pred_check
      _
    $region59: #{tpu_custom_call.1} parent=1 // pred_check_branch
      %122 = sbr.rel (0) target = $region61
    $region60: #{tpu_custom_call.1} parent=1 // pred_region
      %123 = dma.done [#allocation9], 16
    $region61: #{tpu_custom_call.1} parent=1 // pred_fallthru
      _
    // Predicated region
    $region62: #{tpu_custom_call.1} parent=1 // pred_check
      _
    $region63: #{tpu_custom_call.1} parent=1 // pred_check_branch
      %125 = sbr.rel (0) target = $region65
    $region64: #{tpu_custom_call.1} parent=1 // pred_region
      %126 = dma.done [#allocation12], 2048
    $region65: #{tpu_custom_call.1} parent=1 // pred_fallthru
      _
    // Predicated region
    $region66: #{tpu_custom_call.1} parent=1 // pred_check
      _
    $region67: #{tpu_custom_call.1} parent=1 // pred_check_branch
      %128 = sbr.rel (0) target = $region69
    $region68: #{tpu_custom_call.1} parent=1 // pred_region
      %129 = dma.done [#allocation12], 32
    $region69: #{tpu_custom_call.1} parent=1 // pred_fallthru
      _
    // Predicated region
    $region70: #{tpu_custom_call.1} parent=1 // pred_check
      _
    $region71: #{tpu_custom_call.1} parent=1 // pred_check_branch
      %131 = sbr.rel (0) target = $region73
    $region72: #{tpu_custom_call.1} parent=1 // pred_region
      %132 = dma.done [#allocation15], 16
    $region73: #{tpu_custom_call.1} parent=1 // pred_fallthru
      _
    %v134 = vld [vmem:[#allocation2] sm:$0xff]
    %v135 = vld [vmem:[#allocation2 + $0x8] sm:$0xff]
    %v136 = vld [vmem:[#allocation2 + $0x10] sm:$0xff]
    %v137 = vld [vmem:[#allocation2 + $0x18] sm:$0xff]
    %v138 = vld [vmem:[#allocation2 + $0x20] sm:$0xff]
    %v139 = vld [vmem:[#allocation2 + $0x28] sm:$0xff]
    %v140 = vld [vmem:[#allocation2 + $0x30] sm:$0xff]
    %v141 = vld [vmem:[#allocation2 + $0x38] sm:$0xff]
    %v142 = vld [vmem:[#allocation2 + $0x40] sm:$0xff]
    %v143 = vld [vmem:[#allocation2 + $0x48] sm:$0xff]
    %v144 = vpack.c.bf16 %v134, %v134
    %v145 = vpack.c.bf16 %v135, %v135
    %v146 = vpack.c.bf16 %v136, %v136
    %v147 = vpack.c.bf16 %v137, %v137
    %v148 = vpack.c.bf16 %v138, %v138
    %v149 = vpack.c.bf16 %v139, %v139
    %v150 = vpack.c.bf16 %v140, %v140
    %v151 = vpack.c.bf16 %v141, %v141
    %v152 = vpack.c.bf16 %v142, %v142
    %v153 = vpack.c.bf16 %v143, %v143
    %v154 = vld [vmem:[#allocation7] sm:$0xff]
    %v155 = vld [vmem:[#allocation7 + $0x8] sm:$0xff]
    %v156 = vld [vmem:[#allocation7 + $0x10] sm:$0xff]
    %v157 = vld [vmem:[#allocation7 + $0x18] sm:$0xff]
    %v158 = vld [vmem:[#allocation7 + $0x20] sm:$0xff]
    %v159 = vld [vmem:[#allocation7 + $0x28] sm:$0xff]
    %v160 = vld [vmem:[#allocation7 + $0x30] sm:$0xff]
    %v161 = vld [vmem:[#allocation7 + $0x38] sm:$0xff]
    %v162 = vld [vmem:[#allocation7 + $0x40] sm:$0xff]
    %v163 = vld [vmem:[#allocation7 + $0x48] sm:$0xff]
    %v164 = vld [vmem:[#allocation7 + $0x50] sm:$0xff]
    %v165 = vld [vmem:[#allocation7 + $0x58] sm:$0xff]
    %v166 = vld [vmem:[#allocation7 + $0x60] sm:$0xff]
    %v167 = vld [vmem:[#allocation7 + $0x68] sm:$0xff]
    %v168 = vld [vmem:[#allocation7 + $0x70] sm:$0xff]
    %v169 = vld [vmem:[#allocation7 + $0x78] sm:$0xff]
    %v170 = vld [vmem:[#allocation7 + $0x80] sm:$0xff]
    %v171 = vld [vmem:[#allocation7 + $0x88] sm:$0xff]
    %v172 = vld [vmem:[#allocation7 + $0x90] sm:$0xff]
    %v173 = vld [vmem:[#allocation7 + $0x98] sm:$0xff]
    %v174 = vld [vmem:[#allocation7 + $0xa0] sm:$0xff]
    %v175 = vld [vmem:[#allocation7 + $0xa8] sm:$0xff]
    %v176 = vld [vmem:[#allocation7 + $0xb0] sm:$0xff]
    %v177 = vld [vmem:[#allocation7 + $0xb8] sm:$0xff]
    %v178 = vld [vmem:[#allocation7 + $0xc0] sm:$0xff]
    %v179 = vld [vmem:[#allocation7 + $0xc8] sm:$0xff]
    %v180 = vld [vmem:[#allocation7 + $0xd0] sm:$0xff]
    %v181 = vld [vmem:[#allocation7 + $0xd8] sm:$0xff]
    %v182 = vld [vmem:[#allocation7 + $0xe0] sm:$0xff]
    %v183 = vld [vmem:[#allocation7 + $0xe8] sm:$0xff]
    %v184 = vld [vmem:[#allocation7 + $0xf0] sm:$0xff]
    %v185 = vld [vmem:[#allocation7 + $0xf8] sm:$0xff]
    %v186 = vld [vmem:[#allocation7 + $0x100] sm:$0xff]
    %v187 = vld [vmem:[#allocation7 + $0x108] sm:$0xff]
    %v188 = vld [vmem:[#allocation7 + $0x110] sm:$0xff]
    %v189 = vld [vmem:[#allocation7 + $0x118] sm:$0xff]
    %v190 = vld [vmem:[#allocation7 + $0x120] sm:$0xff]
    %v191 = vld [vmem:[#allocation7 + $0x128] sm:$0xff]
    %v192 = vld [vmem:[#allocation7 + $0x130] sm:$0xff]
    %v193 = vld [vmem:[#allocation7 + $0x138] sm:$0xff]
    %v194 = vld [vmem:[#allocation7 + $0x140] sm:$0xff]
    %v195 = vld [vmem:[#allocation7 + $0x148] sm:$0xff]
    %v196 = vld [vmem:[#allocation7 + $0x150] sm:$0xff]
    %v197 = vld [vmem:[#allocation7 + $0x158] sm:$0xff]
    %v198 = vld [vmem:[#allocation7 + $0x160] sm:$0xff]
    %v199 = vld [vmem:[#allocation7 + $0x168] sm:$0xff]
    %v200 = vld [vmem:[#allocation7 + $0x170] sm:$0xff]
    %v201 = vld [vmem:[#allocation7 + $0x178] sm:$0xff]
    %v202 = vld [vmem:[#allocation7 + $0x180] sm:$0xff]
    %v203 = vld [vmem:[#allocation7 + $0x188] sm:$0xff]
    %v204 = vld [vmem:[#allocation7 + $0x190] sm:$0xff]
    %v205 = vld [vmem:[#allocation7 + $0x198] sm:$0xff]
    %v206 = vld [vmem:[#allocation7 + $0x1a0] sm:$0xff]
    %v207 = vld [vmem:[#allocation7 + $0x1a8] sm:$0xff]
    %v208 = vld [vmem:[#allocation7 + $0x1b0] sm:$0xff]
    %v209 = vld [vmem:[#allocation7 + $0x1b8] sm:$0xff]
    %v210 = vld [vmem:[#allocation7 + $0x1c0] sm:$0xff]
    %v211 = vld [vmem:[#allocation7 + $0x1c8] sm:$0xff]
    %v212 = vld [vmem:[#allocation7 + $0x1d0] sm:$0xff]
    %v213 = vld [vmem:[#allocation7 + $0x1d8] sm:$0xff]
    %v214 = vld [vmem:[#allocation7 + $0x1e0] sm:$0xff]
    %v215 = vld [vmem:[#allocation7 + $0x1e8] sm:$0xff]
    %v216 = vld [vmem:[#allocation7 + $0x1f0] sm:$0xff]
    %v217 = vld [vmem:[#allocation7 + $0x1f8] sm:$0xff]
    %v218 = vld [vmem:[#allocation7 + $0x200] sm:$0xff]
    %v219 = vld [vmem:[#allocation7 + $0x208] sm:$0xff]
    %v220 = vld [vmem:[#allocation7 + $0x210] sm:$0xff]
    %v221 = vld [vmem:[#allocation7 + $0x218] sm:$0xff]
    %v222 = vld [vmem:[#allocation7 + $0x220] sm:$0xff]
    %v223 = vld [vmem:[#allocation7 + $0x228] sm:$0xff]
    %v224 = vld [vmem:[#allocation7 + $0x230] sm:$0xff]
    %v225 = vld [vmem:[#allocation7 + $0x238] sm:$0xff]
    %v226 = vld [vmem:[#allocation7 + $0x240] sm:$0xff]
    %v227 = vld [vmem:[#allocation7 + $0x248] sm:$0xff]
    %v228 = vld [vmem:[#allocation7 + $0x250] sm:$0xff]
    %v229 = vld [vmem:[#allocation7 + $0x258] sm:$0xff]
    %v230 = vld [vmem:[#allocation7 + $0x260] sm:$0xff]
    %v231 = vld [vmem:[#allocation7 + $0x268] sm:$0xff]
    %v232 = vld [vmem:[#allocation7 + $0x270] sm:$0xff]
    %v233 = vld [vmem:[#allocation7 + $0x278] sm:$0xff]
    %v234 = vld [vmem:[#allocation7 + $0x280] sm:$0xff]
    %v235 = vld [vmem:[#allocation7 + $0x288] sm:$0xff]
    %v236 = vld [vmem:[#allocation7 + $0x290] sm:$0xff]
    %v237 = vld [vmem:[#allocation7 + $0x298] sm:$0xff]
    %v238 = vld [vmem:[#allocation7 + $0x2a0] sm:$0xff]
    %v239 = vld [vmem:[#allocation7 + $0x2a8] sm:$0xff]
    %v240 = vld [vmem:[#allocation7 + $0x2b0] sm:$0xff]
    %v241 = vld [vmem:[#allocation7 + $0x2b8] sm:$0xff]
    %v242 = vld [vmem:[#allocation7 + $0x2c0] sm:$0xff]
    %v243 = vld [vmem:[#allocation7 + $0x2c8] sm:$0xff]
    %v244 = vld [vmem:[#allocation7 + $0x2d0] sm:$0xff]
    %v245 = vld [vmem:[#allocation7 + $0x2d8] sm:$0xff]
    %v246 = vld [vmem:[#allocation7 + $0x2e0] sm:$0xff]
    %v247 = vld [vmem:[#allocation7 + $0x2e8] sm:$0xff]
    %v248 = vld [vmem:[#allocation7 + $0x2f0] sm:$0xff]
    %v249 = vld [vmem:[#allocation7 + $0x2f8] sm:$0xff]
    %v250 = vld [vmem:[#allocation7 + $0x300] sm:$0xff]
    %v251 = vld [vmem:[#allocation7 + $0x308] sm:$0xff]
    %v252 = vld [vmem:[#allocation7 + $0x310] sm:$0xff]
    %v253 = vld [vmem:[#allocation7 + $0x318] sm:$0xff]
    %v254 = vld [vmem:[#allocation7 + $0x320] sm:$0xff]
    %v255 = vld [vmem:[#allocation7 + $0x328] sm:$0xff]
    %v256 = vld [vmem:[#allocation7 + $0x330] sm:$0xff]
    %v257 = vld [vmem:[#allocation7 + $0x338] sm:$0xff]
    %v258 = vld [vmem:[#allocation7 + $0x340] sm:$0xff]
    %v259 = vld [vmem:[#allocation7 + $0x348] sm:$0xff]
    %v260 = vld [vmem:[#allocation7 + $0x350] sm:$0xff]
    %v261 = vld [vmem:[#allocation7 + $0x358] sm:$0xff]
    %v262 = vld [vmem:[#allocation7 + $0x360] sm:$0xff]
    %v263 = vld [vmem:[#allocation7 + $0x368] sm:$0xff]
    %v264 = vld [vmem:[#allocation7 + $0x370] sm:$0xff]
    %v265 = vld [vmem:[#allocation7 + $0x378] sm:$0xff]
    %v266 = vld [vmem:[#allocation7 + $0x380] sm:$0xff]
    %v267 = vld [vmem:[#allocation7 + $0x388] sm:$0xff]
    %v268 = vld [vmem:[#allocation7 + $0x390] sm:$0xff]
    %v269 = vld [vmem:[#allocation7 + $0x398] sm:$0xff]
    %v270 = vld [vmem:[#allocation7 + $0x3a0] sm:$0xff]
    %v271 = vld [vmem:[#allocation7 + $0x3a8] sm:$0xff]
    %v272 = vld [vmem:[#allocation7 + $0x3b0] sm:$0xff]
    %v273 = vld [vmem:[#allocation7 + $0x3b8] sm:$0xff]
    %v274 = vld [vmem:[#allocation7 + $0x3c0] sm:$0xff]
    %v275 = vld [vmem:[#allocation7 + $0x3c8] sm:$0xff]
    %v276 = vld [vmem:[#allocation7 + $0x3d0] sm:$0xff]
    %v277 = vld [vmem:[#allocation7 + $0x3d8] sm:$0xff]
    %v278 = vld [vmem:[#allocation7 + $0x3e0] sm:$0xff]
    %v279 = vld [vmem:[#allocation7 + $0x3e8] sm:$0xff]
    %v280 = vld [vmem:[#allocation7 + $0x3f0] sm:$0xff]
    %v281 = vld [vmem:[#allocation7 + $0x3f8] sm:$0xff]
    %v282 = vld [vmem:[#allocation7 + $0x400] sm:$0xff]
    %v283 = vld [vmem:[#allocation7 + $0x408] sm:$0xff]
    %v284 = vld [vmem:[#allocation7 + $0x410] sm:$0xff]
    %v285 = vld [vmem:[#allocation7 + $0x418] sm:$0xff]
    %v286 = vld [vmem:[#allocation7 + $0x420] sm:$0xff]
    %v287 = vld [vmem:[#allocation7 + $0x428] sm:$0xff]
    %v288 = vld [vmem:[#allocation7 + $0x430] sm:$0xff]
    %v289 = vld [vmem:[#allocation7 + $0x438] sm:$0xff]
    %v290 = vld [vmem:[#allocation7 + $0x440] sm:$0xff]
    %v291 = vld [vmem:[#allocation7 + $0x448] sm:$0xff]
    %v292 = vld [vmem:[#allocation7 + $0x450] sm:$0xff]
    %v293 = vld [vmem:[#allocation7 + $0x458] sm:$0xff]
    %v294 = vld [vmem:[#allocation7 + $0x460] sm:$0xff]
    %v295 = vld [vmem:[#allocation7 + $0x468] sm:$0xff]
    %v296 = vld [vmem:[#allocation7 + $0x470] sm:$0xff]
    %v297 = vld [vmem:[#allocation7 + $0x478] sm:$0xff]
    %v298 = vld [vmem:[#allocation7 + $0x480] sm:$0xff]
    %v299 = vld [vmem:[#allocation7 + $0x488] sm:$0xff]
    %v300 = vld [vmem:[#allocation7 + $0x490] sm:$0xff]
    %v301 = vld [vmem:[#allocation7 + $0x498] sm:$0xff]
    %v302 = vld [vmem:[#allocation7 + $0x4a0] sm:$0xff]
    %v303 = vld [vmem:[#allocation7 + $0x4a8] sm:$0xff]
    %v304 = vld [vmem:[#allocation7 + $0x4b0] sm:$0xff]
    %v305 = vld [vmem:[#allocation7 + $0x4b8] sm:$0xff]
    %v306 = vld [vmem:[#allocation7 + $0x4c0] sm:$0xff]
    %v307 = vld [vmem:[#allocation7 + $0x4c8] sm:$0xff]
    %v308 = vld [vmem:[#allocation7 + $0x4d0] sm:$0xff]
    %v309 = vld [vmem:[#allocation7 + $0x4d8] sm:$0xff]
    %v310 = vld [vmem:[#allocation7 + $0x4e0] sm:$0xff]
    %v311 = vld [vmem:[#allocation7 + $0x4e8] sm:$0xff]
    %v312 = vld [vmem:[#allocation7 + $0x4f0] sm:$0xff]
    %v313 = vld [vmem:[#allocation7 + $0x4f8] sm:$0xff]
    %v314 = vld [vmem:[#allocation7 + $0x500] sm:$0xff]
    %v315 = vld [vmem:[#allocation7 + $0x508] sm:$0xff]
    %v316 = vld [vmem:[#allocation7 + $0x510] sm:$0xff]
    %v317 = vld [vmem:[#allocation7 + $0x518] sm:$0xff]
    %v318 = vld [vmem:[#allocation7 + $0x520] sm:$0xff]
    %v319 = vld [vmem:[#allocation7 + $0x528] sm:$0xff]
    %v320 = vld [vmem:[#allocation7 + $0x530] sm:$0xff]
    %v321 = vld [vmem:[#allocation7 + $0x538] sm:$0xff]
    %v322 = vld [vmem:[#allocation7 + $0x540] sm:$0xff]
    %v323 = vld [vmem:[#allocation7 + $0x548] sm:$0xff]
    %v324 = vld [vmem:[#allocation7 + $0x550] sm:$0xff]
    %v325 = vld [vmem:[#allocation7 + $0x558] sm:$0xff]
    %v326 = vld [vmem:[#allocation7 + $0x560] sm:$0xff]
    %v327 = vld [vmem:[#allocation7 + $0x568] sm:$0xff]
    %v328 = vld [vmem:[#allocation7 + $0x570] sm:$0xff]
    %v329 = vld [vmem:[#allocation7 + $0x578] sm:$0xff]
    %v330 = vld [vmem:[#allocation7 + $0x580] sm:$0xff]
    %v331 = vld [vmem:[#allocation7 + $0x588] sm:$0xff]
    %v332 = vld [vmem:[#allocation7 + $0x590] sm:$0xff]
    %v333 = vld [vmem:[#allocation7 + $0x598] sm:$0xff]
    %v334 = vld [vmem:[#allocation7 + $0x5a0] sm:$0xff]
    %v335 = vld [vmem:[#allocation7 + $0x5a8] sm:$0xff]
    %v336 = vld [vmem:[#allocation7 + $0x5b0] sm:$0xff]
    %v337 = vld [vmem:[#allocation7 + $0x5b8] sm:$0xff]
    %v338 = vld [vmem:[#allocation7 + $0x5c0] sm:$0xff]
    %v339 = vld [vmem:[#allocation7 + $0x5c8] sm:$0xff]
    %v340 = vld [vmem:[#allocation7 + $0x5d0] sm:$0xff]
    %v341 = vld [vmem:[#allocation7 + $0x5d8] sm:$0xff]
    %v342 = vld [vmem:[#allocation7 + $0x5e0] sm:$0xff]
    %v343 = vld [vmem:[#allocation7 + $0x5e8] sm:$0xff]
    %v344 = vld [vmem:[#allocation7 + $0x5f0] sm:$0xff]
    %v345 = vld [vmem:[#allocation7 + $0x5f8] sm:$0xff]
    %v346 = vld [vmem:[#allocation7 + $0x600] sm:$0xff]
    %v347 = vld [vmem:[#allocation7 + $0x608] sm:$0xff]
    %v348 = vld [vmem:[#allocation7 + $0x610] sm:$0xff]
    %v349 = vld [vmem:[#allocation7 + $0x618] sm:$0xff]
    %v350 = vld [vmem:[#allocation7 + $0x620] sm:$0xff]
    %v351 = vld [vmem:[#allocation7 + $0x628] sm:$0xff]
    %v352 = vld [vmem:[#allocation7 + $0x630] sm:$0xff]
    %v353 = vld [vmem:[#allocation7 + $0x638] sm:$0xff]
    %v354 = vld [vmem:[#allocation7 + $0x640] sm:$0xff]
    %v355 = vld [vmem:[#allocation7 + $0x648] sm:$0xff]
    %v356 = vld [vmem:[#allocation7 + $0x650] sm:$0xff]
    %v357 = vld [vmem:[#allocation7 + $0x658] sm:$0xff]
    %v358 = vld [vmem:[#allocation7 + $0x660] sm:$0xff]
    %v359 = vld [vmem:[#allocation7 + $0x668] sm:$0xff]
    %v360 = vld [vmem:[#allocation7 + $0x670] sm:$0xff]
    %v361 = vld [vmem:[#allocation7 + $0x678] sm:$0xff]
    %v362 = vld [vmem:[#allocation7 + $0x680] sm:$0xff]
    %v363 = vld [vmem:[#allocation7 + $0x688] sm:$0xff]
    %v364 = vld [vmem:[#allocation7 + $0x690] sm:$0xff]
    %v365 = vld [vmem:[#allocation7 + $0x698] sm:$0xff]
    %v366 = vld [vmem:[#allocation7 + $0x6a0] sm:$0xff]
    %v367 = vld [vmem:[#allocation7 + $0x6a8] sm:$0xff]
    %v368 = vld [vmem:[#allocation7 + $0x6b0] sm:$0xff]
    %v369 = vld [vmem:[#allocation7 + $0x6b8] sm:$0xff]
    %v370 = vld [vmem:[#allocation7 + $0x6c0] sm:$0xff]
    %v371 = vld [vmem:[#allocation7 + $0x6c8] sm:$0xff]
    %v372 = vld [vmem:[#allocation7 + $0x6d0] sm:$0xff]
    %v373 = vld [vmem:[#allocation7 + $0x6d8] sm:$0xff]
    %v374 = vld [vmem:[#allocation7 + $0x6e0] sm:$0xff]
    %v375 = vld [vmem:[#allocation7 + $0x6e8] sm:$0xff]
    %v376 = vld [vmem:[#allocation7 + $0x6f0] sm:$0xff]
    %v377 = vld [vmem:[#allocation7 + $0x6f8] sm:$0xff]
    %v378 = vld [vmem:[#allocation7 + $0x700] sm:$0xff]
    %v379 = vld [vmem:[#allocation7 + $0x708] sm:$0xff]
    %v380 = vld [vmem:[#allocation7 + $0x710] sm:$0xff]
    %v381 = vld [vmem:[#allocation7 + $0x718] sm:$0xff]
    %v382 = vld [vmem:[#allocation7 + $0x720] sm:$0xff]
    %v383 = vld [vmem:[#allocation7 + $0x728] sm:$0xff]
    %v384 = vld [vmem:[#allocation7 + $0x730] sm:$0xff]
    %v385 = vld [vmem:[#allocation7 + $0x738] sm:$0xff]
    %v386 = vld [vmem:[#allocation7 + $0x740] sm:$0xff]
    %v387 = vld [vmem:[#allocation7 + $0x748] sm:$0xff]
    %v388 = vld [vmem:[#allocation7 + $0x750] sm:$0xff]
    %v389 = vld [vmem:[#allocation7 + $0x758] sm:$0xff]
    %v390 = vld [vmem:[#allocation7 + $0x760] sm:$0xff]
    %v391 = vld [vmem:[#allocation7 + $0x768] sm:$0xff]
    %v392 = vld [vmem:[#allocation7 + $0x770] sm:$0xff]
    %v393 = vld [vmem:[#allocation7 + $0x778] sm:$0xff]
    %v394 = vld [vmem:[#allocation7 + $0x780] sm:$0xff]
    %v395 = vld [vmem:[#allocation7 + $0x788] sm:$0xff]
    %v396 = vld [vmem:[#allocation7 + $0x790] sm:$0xff]
    %v397 = vld [vmem:[#allocation7 + $0x798] sm:$0xff]
    %v398 = vld [vmem:[#allocation7 + $0x7a0] sm:$0xff]
    %v399 = vld [vmem:[#allocation7 + $0x7a8] sm:$0xff]
    %v400 = vld [vmem:[#allocation7 + $0x7b0] sm:$0xff]
    %v401 = vld [vmem:[#allocation7 + $0x7b8] sm:$0xff]
    %v402 = vld [vmem:[#allocation7 + $0x7c0] sm:$0xff]
    %v403 = vld [vmem:[#allocation7 + $0x7c8] sm:$0xff]
    %v404 = vld [vmem:[#allocation7 + $0x7d0] sm:$0xff]
    %v405 = vld [vmem:[#allocation7 + $0x7d8] sm:$0xff]
    %v406 = vld [vmem:[#allocation7 + $0x7e0] sm:$0xff]
    %v407 = vld [vmem:[#allocation7 + $0x7e8] sm:$0xff]
    %v408 = vld [vmem:[#allocation7 + $0x7f0] sm:$0xff]
    %v409 = vld [vmem:[#allocation7 + $0x7f8] sm:$0xff]
    %v410 = vld [vmem:[#allocation7 + $0x800] sm:$0xff]
    %v411 = vld [vmem:[#allocation7 + $0x808] sm:$0xff]
    %v412 = vld [vmem:[#allocation7 + $0x810] sm:$0xff]
    %v413 = vld [vmem:[#allocation7 + $0x818] sm:$0xff]
    %v414 = vld [vmem:[#allocation7 + $0x820] sm:$0xff]
    %v415 = vld [vmem:[#allocation7 + $0x828] sm:$0xff]
    %v416 = vld [vmem:[#allocation7 + $0x830] sm:$0xff]
    %v417 = vld [vmem:[#allocation7 + $0x838] sm:$0xff]
    %v418 = vld [vmem:[#allocation7 + $0x840] sm:$0xff]
    %v419 = vld [vmem:[#allocation7 + $0x848] sm:$0xff]
    %v420 = vld [vmem:[#allocation7 + $0x850] sm:$0xff]
    %v421 = vld [vmem:[#allocation7 + $0x858] sm:$0xff]
    %v422 = vld [vmem:[#allocation7 + $0x860] sm:$0xff]
    %v423 = vld [vmem:[#allocation7 + $0x868] sm:$0xff]
    %v424 = vld [vmem:[#allocation7 + $0x870] sm:$0xff]
    %v425 = vld [vmem:[#allocation7 + $0x878] sm:$0xff]
    %v426 = vld [vmem:[#allocation7 + $0x880] sm:$0xff]
    %v427 = vld [vmem:[#allocation7 + $0x888] sm:$0xff]
    %v428 = vld [vmem:[#allocation7 + $0x890] sm:$0xff]
    %v429 = vld [vmem:[#allocation7 + $0x898] sm:$0xff]
    %v430 = vld [vmem:[#allocation7 + $0x8a0] sm:$0xff]
    %v431 = vld [vmem:[#allocation7 + $0x8a8] sm:$0xff]
    %v432 = vld [vmem:[#allocation7 + $0x8b0] sm:$0xff]
    %v433 = vld [vmem:[#allocation7 + $0x8b8] sm:$0xff]
    %v434 = vld [vmem:[#allocation7 + $0x8c0] sm:$0xff]
    %v435 = vld [vmem:[#allocation7 + $0x8c8] sm:$0xff]
    %v436 = vld [vmem:[#allocation7 + $0x8d0] sm:$0xff]
    %v437 = vld [vmem:[#allocation7 + $0x8d8] sm:$0xff]
    %v438 = vld [vmem:[#allocation7 + $0x8e0] sm:$0xff]
    %v439 = vld [vmem:[#allocation7 + $0x8e8] sm:$0xff]
    %v440 = vld [vmem:[#allocation7 + $0x8f0] sm:$0xff]
    %v441 = vld [vmem:[#allocation7 + $0x8f8] sm:$0xff]
    %v442 = vld [vmem:[#allocation7 + $0x900] sm:$0xff]
    %v443 = vld [vmem:[#allocation7 + $0x908] sm:$0xff]
    %v444 = vld [vmem:[#allocation7 + $0x910] sm:$0xff]
    %v445 = vld [vmem:[#allocation7 + $0x918] sm:$0xff]
    %v446 = vld [vmem:[#allocation7 + $0x920] sm:$0xff]
    %v447 = vld [vmem:[#allocation7 + $0x928] sm:$0xff]
    %v448 = vld [vmem:[#allocation7 + $0x930] sm:$0xff]
    %v449 = vld [vmem:[#allocation7 + $0x938] sm:$0xff]
    %v450 = vld [vmem:[#allocation7 + $0x940] sm:$0xff]
    %v451 = vld [vmem:[#allocation7 + $0x948] sm:$0xff]
    %v452 = vld [vmem:[#allocation7 + $0x950] sm:$0xff]
    %v453 = vld [vmem:[#allocation7 + $0x958] sm:$0xff]
    %v454 = vld [vmem:[#allocation7 + $0x960] sm:$0xff]
    %v455 = vld [vmem:[#allocation7 + $0x968] sm:$0xff]
    %v456 = vld [vmem:[#allocation7 + $0x970] sm:$0xff]
    %v457 = vld [vmem:[#allocation7 + $0x978] sm:$0xff]
    %v458 = vld [vmem:[#allocation7 + $0x980] sm:$0xff]
    %v459 = vld [vmem:[#allocation7 + $0x988] sm:$0xff]
    %v460 = vld [vmem:[#allocation7 + $0x990] sm:$0xff]
    %v461 = vld [vmem:[#allocation7 + $0x998] sm:$0xff]
    %v462 = vld [vmem:[#allocation7 + $0x9a0] sm:$0xff]
    %v463 = vld [vmem:[#allocation7 + $0x9a8] sm:$0xff]
    %v464 = vld [vmem:[#allocation7 + $0x9b0] sm:$0xff]
    %v465 = vld [vmem:[#allocation7 + $0x9b8] sm:$0xff]
    %v466 = vld [vmem:[#allocation7 + $0x9c0] sm:$0xff]
    %v467 = vld [vmem:[#allocation7 + $0x9c8] sm:$0xff]
    %v468 = vld [vmem:[#allocation7 + $0x9d0] sm:$0xff]
    %v469 = vld [vmem:[#allocation7 + $0x9d8] sm:$0xff]
    %v470 = vld [vmem:[#allocation7 + $0x9e0] sm:$0xff]
    %v471 = vld [vmem:[#allocation7 + $0x9e8] sm:$0xff]
    %v472 = vld [vmem:[#allocation7 + $0x9f0] sm:$0xff]
    %v473 = vld [vmem:[#allocation7 + $0x9f8] sm:$0xff]
    %v474 = vld [vmem:[#allocation8] sm:$0xf]
    %v476 = vlaneseq
    %v477 = vshrl.u32 %v476, 7
    %v478 = vsub.s32 0, %v477
    %v479 = vrot.slane %v474, %v478
    %v480 = vlaneseq
    %v481 = vshrl.u32 %v480, 7
    %v482 = vsub.s32 1, %v481
    %v483 = vrot.slane %v474, %v482
    %v484 = vlaneseq
    %v485 = vshrl.u32 %v484, 7
    %v486 = vsub.s32 2, %v485
    %v487 = vrot.slane %v474, %v486
    %v488 = vlaneseq
    %v489 = vshrl.u32 %v488, 7
    %v490 = vsub.s32 3, %v489
    %v491 = vrot.slane %v474, %v490
    %v816 = vunpack.c.l.b16 %v154
    %v817 = vunpack.c.h.b16 %v154
    %v818 = vunpack.c.l.b16 %v155
    %v819 = vunpack.c.h.b16 %v155
    %v820 = vunpack.c.l.b16 %v156
    %v821 = vunpack.c.h.b16 %v156
    %v822 = vunpack.c.l.b16 %v157
    %v823 = vunpack.c.h.b16 %v157
    %v824 = vunpack.c.l.b16 %v158
    %v825 = vunpack.c.h.b16 %v158
    %v826 = vunpack.c.l.b16 %v159
    %v827 = vunpack.c.h.b16 %v159
    %v828 = vunpack.c.l.b16 %v160
    %v829 = vunpack.c.h.b16 %v160
    %v830 = vunpack.c.l.b16 %v161
    %v831 = vunpack.c.h.b16 %v161
    %v832 = vunpack.c.l.b16 %v162
    %v833 = vunpack.c.h.b16 %v162
    %v834 = vunpack.c.l.b16 %v163
    %v835 = vunpack.c.h.b16 %v163
    %v836 = vunpack.c.l.b16 %v164
    %v837 = vunpack.c.h.b16 %v164
    %v838 = vunpack.c.l.b16 %v165
    %v839 = vunpack.c.h.b16 %v165
    %v840 = vunpack.c.l.b16 %v166
    %v841 = vunpack.c.h.b16 %v166
    %v842 = vunpack.c.l.b16 %v167
    %v843 = vunpack.c.h.b16 %v167
    %v844 = vunpack.c.l.b16 %v168
    %v845 = vunpack.c.h.b16 %v168
    %v846 = vunpack.c.l.b16 %v169
    %v847 = vunpack.c.h.b16 %v169
    %v848 = vunpack.c.l.b16 %v170
    %v849 = vunpack.c.h.b16 %v170
    %v850 = vunpack.c.l.b16 %v171
    %v851 = vunpack.c.h.b16 %v171
    %v852 = vunpack.c.l.b16 %v172
    %v853 = vunpack.c.h.b16 %v172
    %v854 = vunpack.c.l.b16 %v173
    %v855 = vunpack.c.h.b16 %v173
    %v856 = vunpack.c.l.b16 %v174
    %v857 = vunpack.c.h.b16 %v174
    %v858 = vunpack.c.l.b16 %v175
    %v859 = vunpack.c.h.b16 %v175
    %v860 = vunpack.c.l.b16 %v176
    %v861 = vunpack.c.h.b16 %v176
    %v862 = vunpack.c.l.b16 %v177
    %v863 = vunpack.c.h.b16 %v177
    %v864 = vunpack.c.l.b16 %v178
    %v865 = vunpack.c.h.b16 %v178
    %v866 = vunpack.c.l.b16 %v179
    %v867 = vunpack.c.h.b16 %v179
    %v868 = vunpack.c.l.b16 %v180
    %v869 = vunpack.c.h.b16 %v180
    %v870 = vunpack.c.l.b16 %v181
    %v871 = vunpack.c.h.b16 %v181
    %v872 = vunpack.c.l.b16 %v182
    %v873 = vunpack.c.h.b16 %v182
    %v874 = vunpack.c.l.b16 %v183
    %v875 = vunpack.c.h.b16 %v183
    %v876 = vunpack.c.l.b16 %v184
    %v877 = vunpack.c.h.b16 %v184
    %v878 = vunpack.c.l.b16 %v185
    %v879 = vunpack.c.h.b16 %v185
    %v880 = vunpack.c.l.b16 %v186
    %v881 = vunpack.c.h.b16 %v186
    %v882 = vunpack.c.l.b16 %v187
    %v883 = vunpack.c.h.b16 %v187
    %v884 = vunpack.c.l.b16 %v188
    %v885 = vunpack.c.h.b16 %v188
    %v886 = vunpack.c.l.b16 %v189
    %v887 = vunpack.c.h.b16 %v189
    %v888 = vunpack.c.l.b16 %v190
    %v889 = vunpack.c.h.b16 %v190
    %v890 = vunpack.c.l.b16 %v191
    %v891 = vunpack.c.h.b16 %v191
    %v892 = vunpack.c.l.b16 %v192
    %v893 = vunpack.c.h.b16 %v192
    %v894 = vunpack.c.l.b16 %v193
    %v895 = vunpack.c.h.b16 %v193
    %v896 = vunpack.c.l.b16 %v194
    %v897 = vunpack.c.h.b16 %v194
    %v898 = vunpack.c.l.b16 %v195
    %v899 = vunpack.c.h.b16 %v195
    %v900 = vunpack.c.l.b16 %v196
    %v901 = vunpack.c.h.b16 %v196
    %v902 = vunpack.c.l.b16 %v197
    %v903 = vunpack.c.h.b16 %v197
    %v904 = vunpack.c.l.b16 %v198
    %v905 = vunpack.c.h.b16 %v198
    %v906 = vunpack.c.l.b16 %v199
    %v907 = vunpack.c.h.b16 %v199
    %v908 = vunpack.c.l.b16 %v200
    %v909 = vunpack.c.h.b16 %v200
    %v910 = vunpack.c.l.b16 %v201
    %v911 = vunpack.c.h.b16 %v201
    %v912 = vunpack.c.l.b16 %v202
    %v913 = vunpack.c.h.b16 %v202
    %v914 = vunpack.c.l.b16 %v203
    %v915 = vunpack.c.h.b16 %v203
    %v916 = vunpack.c.l.b16 %v204
    %v917 = vunpack.c.h.b16 %v204
    %v918 = vunpack.c.l.b16 %v205
    %v919 = vunpack.c.h.b16 %v205
    %v920 = vunpack.c.l.b16 %v206
    %v921 = vunpack.c.h.b16 %v206
    %v922 = vunpack.c.l.b16 %v207
    %v923 = vunpack.c.h.b16 %v207
    %v924 = vunpack.c.l.b16 %v208
    %v925 = vunpack.c.h.b16 %v208
    %v926 = vunpack.c.l.b16 %v209
    %v927 = vunpack.c.h.b16 %v209
    %v928 = vunpack.c.l.b16 %v210
    %v929 = vunpack.c.h.b16 %v210
    %v930 = vunpack.c.l.b16 %v211
    %v931 = vunpack.c.h.b16 %v211
    %v932 = vunpack.c.l.b16 %v212
    %v933 = vunpack.c.h.b16 %v212
    %v934 = vunpack.c.l.b16 %v213
    %v935 = vunpack.c.h.b16 %v213
    %v936 = vunpack.c.l.b16 %v214
    %v937 = vunpack.c.h.b16 %v214
    %v938 = vunpack.c.l.b16 %v215
    %v939 = vunpack.c.h.b16 %v215
    %v940 = vunpack.c.l.b16 %v216
    %v941 = vunpack.c.h.b16 %v216
    %v942 = vunpack.c.l.b16 %v217
    %v943 = vunpack.c.h.b16 %v217
    %v944 = vunpack.c.l.b16 %v218
    %v945 = vunpack.c.h.b16 %v218
    %v946 = vunpack.c.l.b16 %v219
    %v947 = vunpack.c.h.b16 %v219
    %v948 = vunpack.c.l.b16 %v220
    %v949 = vunpack.c.h.b16 %v220
    %v950 = vunpack.c.l.b16 %v221
    %v951 = vunpack.c.h.b16 %v221
    %v952 = vunpack.c.l.b16 %v222
    %v953 = vunpack.c.h.b16 %v222
    %v954 = vunpack.c.l.b16 %v223
    %v955 = vunpack.c.h.b16 %v223
    %v956 = vunpack.c.l.b16 %v224
    %v957 = vunpack.c.h.b16 %v224
    %v958 = vunpack.c.l.b16 %v225
    %v959 = vunpack.c.h.b16 %v225
    %v960 = vunpack.c.l.b16 %v226
    %v961 = vunpack.c.h.b16 %v226
    %v962 = vunpack.c.l.b16 %v227
    %v963 = vunpack.c.h.b16 %v227
    %v964 = vunpack.c.l.b16 %v228
    %v965 = vunpack.c.h.b16 %v228
    %v966 = vunpack.c.l.b16 %v229
    %v967 = vunpack.c.h.b16 %v229
    %v968 = vunpack.c.l.b16 %v230
    %v969 = vunpack.c.h.b16 %v230
    %v970 = vunpack.c.l.b16 %v231
    %v971 = vunpack.c.h.b16 %v231
    %v972 = vunpack.c.l.b16 %v232
    %v973 = vunpack.c.h.b16 %v232
    %v974 = vunpack.c.l.b16 %v233
    %v975 = vunpack.c.h.b16 %v233
    %v976 = vunpack.c.l.b16 %v234
    %v977 = vunpack.c.h.b16 %v234
    %v978 = vunpack.c.l.b16 %v235
    %v979 = vunpack.c.h.b16 %v235
    %v980 = vunpack.c.l.b16 %v236
    %v981 = vunpack.c.h.b16 %v236
    %v982 = vunpack.c.l.b16 %v237
    %v983 = vunpack.c.h.b16 %v237
    %v984 = vunpack.c.l.b16 %v238
    %v985 = vunpack.c.h.b16 %v238
    %v986 = vunpack.c.l.b16 %v239
    %v987 = vunpack.c.h.b16 %v239
    %v988 = vunpack.c.l.b16 %v240
    %v989 = vunpack.c.h.b16 %v240
    %v990 = vunpack.c.l.b16 %v241
    %v991 = vunpack.c.h.b16 %v241
    %v992 = vunpack.c.l.b16 %v242
    %v993 = vunpack.c.h.b16 %v242
    %v994 = vunpack.c.l.b16 %v243
    %v995 = vunpack.c.h.b16 %v243
    %v996 = vunpack.c.l.b16 %v244
    %v997 = vunpack.c.h.b16 %v244
    %v998 = vunpack.c.l.b16 %v245
    %v999 = vunpack.c.h.b16 %v245
    %v1000 = vunpack.c.l.b16 %v246
    %v1001 = vunpack.c.h.b16 %v246
    %v1002 = vunpack.c.l.b16 %v247
    %v1003 = vunpack.c.h.b16 %v247
    %v1004 = vunpack.c.l.b16 %v248
    %v1005 = vunpack.c.h.b16 %v248
    %v1006 = vunpack.c.l.b16 %v249
    %v1007 = vunpack.c.h.b16 %v249
    %v1008 = vunpack.c.l.b16 %v250
    %v1009 = vunpack.c.h.b16 %v250
    %v1010 = vunpack.c.l.b16 %v251
    %v1011 = vunpack.c.h.b16 %v251
    %v1012 = vunpack.c.l.b16 %v252
    %v1013 = vunpack.c.h.b16 %v252
    %v1014 = vunpack.c.l.b16 %v253
    %v1015 = vunpack.c.h.b16 %v253
    %v1016 = vunpack.c.l.b16 %v254
    %v1017 = vunpack.c.h.b16 %v254
    %v1018 = vunpack.c.l.b16 %v255
    %v1019 = vunpack.c.h.b16 %v255
    %v1020 = vunpack.c.l.b16 %v256
    %v1021 = vunpack.c.h.b16 %v256
    %v1022 = vunpack.c.l.b16 %v257
    %v1023 = vunpack.c.h.b16 %v257
    %v1024 = vunpack.c.l.b16 %v258
    %v1025 = vunpack.c.h.b16 %v258
    %v1026 = vunpack.c.l.b16 %v259
    %v1027 = vunpack.c.h.b16 %v259
    %v1028 = vunpack.c.l.b16 %v260
    %v1029 = vunpack.c.h.b16 %v260
    %v1030 = vunpack.c.l.b16 %v261
    %v1031 = vunpack.c.h.b16 %v261
    %v1032 = vunpack.c.l.b16 %v262
    %v1033 = vunpack.c.h.b16 %v262
    %v1034 = vunpack.c.l.b16 %v263
    %v1035 = vunpack.c.h.b16 %v263
    %v1036 = vunpack.c.l.b16 %v264
    %v1037 = vunpack.c.h.b16 %v264
    %v1038 = vunpack.c.l.b16 %v265
    %v1039 = vunpack.c.h.b16 %v265
    %v1040 = vunpack.c.l.b16 %v266
    %v1041 = vunpack.c.h.b16 %v266
    %v1042 = vunpack.c.l.b16 %v267
    %v1043 = vunpack.c.h.b16 %v267
    %v1044 = vunpack.c.l.b16 %v268
    %v1045 = vunpack.c.h.b16 %v268
    %v1046 = vunpack.c.l.b16 %v269
    %v1047 = vunpack.c.h.b16 %v269
    %v1048 = vunpack.c.l.b16 %v270
    %v1049 = vunpack.c.h.b16 %v270
    %v1050 = vunpack.c.l.b16 %v271
    %v1051 = vunpack.c.h.b16 %v271
    %v1052 = vunpack.c.l.b16 %v272
    %v1053 = vunpack.c.h.b16 %v272
    %v1054 = vunpack.c.l.b16 %v273
    %v1055 = vunpack.c.h.b16 %v273
    %v1056 = vunpack.c.l.b16 %v274
    %v1057 = vunpack.c.h.b16 %v274
    %v1058 = vunpack.c.l.b16 %v275
    %v1059 = vunpack.c.h.b16 %v275
    %v1060 = vunpack.c.l.b16 %v276
    %v1061 = vunpack.c.h.b16 %v276
    %v1062 = vunpack.c.l.b16 %v277
    %v1063 = vunpack.c.h.b16 %v277
    %v1064 = vunpack.c.l.b16 %v278
    %v1065 = vunpack.c.h.b16 %v278
    %v1066 = vunpack.c.l.b16 %v279
    %v1067 = vunpack.c.h.b16 %v279
    %v1068 = vunpack.c.l.b16 %v280
    %v1069 = vunpack.c.h.b16 %v280
    %v1070 = vunpack.c.l.b16 %v281
    %v1071 = vunpack.c.h.b16 %v281
    %v1072 = vunpack.c.l.b16 %v282
    %v1073 = vunpack.c.h.b16 %v282
    %v1074 = vunpack.c.l.b16 %v283
    %v1075 = vunpack.c.h.b16 %v283
    %v1076 = vunpack.c.l.b16 %v284
    %v1077 = vunpack.c.h.b16 %v284
    %v1078 = vunpack.c.l.b16 %v285
    %v1079 = vunpack.c.h.b16 %v285
    %v1080 = vunpack.c.l.b16 %v286
    %v1081 = vunpack.c.h.b16 %v286
    %v1082 = vunpack.c.l.b16 %v287
    %v1083 = vunpack.c.h.b16 %v287
    %v1084 = vunpack.c.l.b16 %v288
    %v1085 = vunpack.c.h.b16 %v288
    %v1086 = vunpack.c.l.b16 %v289
    %v1087 = vunpack.c.h.b16 %v289
    %v1088 = vunpack.c.l.b16 %v290
    %v1089 = vunpack.c.h.b16 %v290
    %v1090 = vunpack.c.l.b16 %v291
    %v1091 = vunpack.c.h.b16 %v291
    %v1092 = vunpack.c.l.b16 %v292
    %v1093 = vunpack.c.h.b16 %v292
    %v1094 = vunpack.c.l.b16 %v293
    %v1095 = vunpack.c.h.b16 %v293
    %v1096 = vunpack.c.l.b16 %v294
    %v1097 = vunpack.c.h.b16 %v294
    %v1098 = vunpack.c.l.b16 %v295
    %v1099 = vunpack.c.h.b16 %v295
    %v1100 = vunpack.c.l.b16 %v296
    %v1101 = vunpack.c.h.b16 %v296
    %v1102 = vunpack.c.l.b16 %v297
    %v1103 = vunpack.c.h.b16 %v297
    %v1104 = vunpack.c.l.b16 %v298
    %v1105 = vunpack.c.h.b16 %v298
    %v1106 = vunpack.c.l.b16 %v299
    %v1107 = vunpack.c.h.b16 %v299
    %v1108 = vunpack.c.l.b16 %v300
    %v1109 = vunpack.c.h.b16 %v300
    %v1110 = vunpack.c.l.b16 %v301
    %v1111 = vunpack.c.h.b16 %v301
    %v1112 = vunpack.c.l.b16 %v302
    %v1113 = vunpack.c.h.b16 %v302
    %v1114 = vunpack.c.l.b16 %v303
    %v1115 = vunpack.c.h.b16 %v303
    %v1116 = vunpack.c.l.b16 %v304
    %v1117 = vunpack.c.h.b16 %v304
    %v1118 = vunpack.c.l.b16 %v305
    %v1119 = vunpack.c.h.b16 %v305
    %v1120 = vunpack.c.l.b16 %v306
    %v1121 = vunpack.c.h.b16 %v306
    %v1122 = vunpack.c.l.b16 %v307
    %v1123 = vunpack.c.h.b16 %v307
    %v1124 = vunpack.c.l.b16 %v308
    %v1125 = vunpack.c.h.b16 %v308
    %v1126 = vunpack.c.l.b16 %v309
    %v1127 = vunpack.c.h.b16 %v309
    %v1128 = vunpack.c.l.b16 %v310
    %v1129 = vunpack.c.h.b16 %v310
    %v1130 = vunpack.c.l.b16 %v311
    %v1131 = vunpack.c.h.b16 %v311
    %v1132 = vunpack.c.l.b16 %v312
    %v1133 = vunpack.c.h.b16 %v312
    %v1134 = vunpack.c.l.b16 %v313
    %v1135 = vunpack.c.h.b16 %v313
    %v1136 = vunpack.c.l.b16 %v314
    %v1137 = vunpack.c.h.b16 %v314
    %v1138 = vunpack.c.l.b16 %v315
    %v1139 = vunpack.c.h.b16 %v315
    %v1140 = vunpack.c.l.b16 %v316
    %v1141 = vunpack.c.h.b16 %v316
    %v1142 = vunpack.c.l.b16 %v317
    %v1143 = vunpack.c.h.b16 %v317
    %v1144 = vunpack.c.l.b16 %v318
    %v1145 = vunpack.c.h.b16 %v318
    %v1146 = vunpack.c.l.b16 %v319
    %v1147 = vunpack.c.h.b16 %v319
    %v1148 = vunpack.c.l.b16 %v320
    %v1149 = vunpack.c.h.b16 %v320
    %v1150 = vunpack.c.l.b16 %v321
    %v1151 = vunpack.c.h.b16 %v321
    %v1152 = vunpack.c.l.b16 %v322
    %v1153 = vunpack.c.h.b16 %v322
    %v1154 = vunpack.c.l.b16 %v323
    %v1155 = vunpack.c.h.b16 %v323
    %v1156 = vunpack.c.l.b16 %v324
    %v1157 = vunpack.c.h.b16 %v324
    %v1158 = vunpack.c.l.b16 %v325
    %v1159 = vunpack.c.h.b16 %v325
    %v1160 = vunpack.c.l.b16 %v326
    %v1161 = vunpack.c.h.b16 %v326
    %v1162 = vunpack.c.l.b16 %v327
    %v1163 = vunpack.c.h.b16 %v327
    %v1164 = vunpack.c.l.b16 %v328
    %v1165 = vunpack.c.h.b16 %v328
    %v1166 = vunpack.c.l.b16 %v329
    %v1167 = vunpack.c.h.b16 %v329
    %v1168 = vunpack.c.l.b16 %v330
    %v1169 = vunpack.c.h.b16 %v330
    %v1170 = vunpack.c.l.b16 %v331
    %v1171 = vunpack.c.h.b16 %v331
    %v1172 = vunpack.c.l.b16 %v332
    %v1173 = vunpack.c.h.b16 %v332
    %v1174 = vunpack.c.l.b16 %v333
    %v1175 = vunpack.c.h.b16 %v333
    %v1176 = vunpack.c.l.b16 %v334
    %v1177 = vunpack.c.h.b16 %v334
    %v1178 = vunpack.c.l.b16 %v335
    %v1179 = vunpack.c.h.b16 %v335
    %v1180 = vunpack.c.l.b16 %v336
    %v1181 = vunpack.c.h.b16 %v336
    %v1182 = vunpack.c.l.b16 %v337
    %v1183 = vunpack.c.h.b16 %v337
    %v1184 = vunpack.c.l.b16 %v338
    %v1185 = vunpack.c.h.b16 %v338
    %v1186 = vunpack.c.l.b16 %v339
    %v1187 = vunpack.c.h.b16 %v339
    %v1188 = vunpack.c.l.b16 %v340
    %v1189 = vunpack.c.h.b16 %v340
    %v1190 = vunpack.c.l.b16 %v341
    %v1191 = vunpack.c.h.b16 %v341
    %v1192 = vunpack.c.l.b16 %v342
    %v1193 = vunpack.c.h.b16 %v342
    %v1194 = vunpack.c.l.b16 %v343
    %v1195 = vunpack.c.h.b16 %v343
    %v1196 = vunpack.c.l.b16 %v344
    %v1197 = vunpack.c.h.b16 %v344
    %v1198 = vunpack.c.l.b16 %v345
    %v1199 = vunpack.c.h.b16 %v345
    %v1200 = vunpack.c.l.b16 %v346
    %v1201 = vunpack.c.h.b16 %v346
    %v1202 = vunpack.c.l.b16 %v347
    %v1203 = vunpack.c.h.b16 %v347
    %v1204 = vunpack.c.l.b16 %v348
    %v1205 = vunpack.c.h.b16 %v348
    %v1206 = vunpack.c.l.b16 %v349
    %v1207 = vunpack.c.h.b16 %v349
    %v1208 = vunpack.c.l.b16 %v350
    %v1209 = vunpack.c.h.b16 %v350
    %v1210 = vunpack.c.l.b16 %v351
    %v1211 = vunpack.c.h.b16 %v351
    %v1212 = vunpack.c.l.b16 %v352
    %v1213 = vunpack.c.h.b16 %v352
    %v1214 = vunpack.c.l.b16 %v353
    %v1215 = vunpack.c.h.b16 %v353
    %v1216 = vunpack.c.l.b16 %v354
    %v1217 = vunpack.c.h.b16 %v354
    %v1218 = vunpack.c.l.b16 %v355
    %v1219 = vunpack.c.h.b16 %v355
    %v1220 = vunpack.c.l.b16 %v356
    %v1221 = vunpack.c.h.b16 %v356
    %v1222 = vunpack.c.l.b16 %v357
    %v1223 = vunpack.c.h.b16 %v357
    %v1224 = vunpack.c.l.b16 %v358
    %v1225 = vunpack.c.h.b16 %v358
    %v1226 = vunpack.c.l.b16 %v359
    %v1227 = vunpack.c.h.b16 %v359
    %v1228 = vunpack.c.l.b16 %v360
    %v1229 = vunpack.c.h.b16 %v360
    %v1230 = vunpack.c.l.b16 %v361
    %v1231 = vunpack.c.h.b16 %v361
    %v1232 = vunpack.c.l.b16 %v362
    %v1233 = vunpack.c.h.b16 %v362
    %v1234 = vunpack.c.l.b16 %v363
    %v1235 = vunpack.c.h.b16 %v363
    %v1236 = vunpack.c.l.b16 %v364
    %v1237 = vunpack.c.h.b16 %v364
    %v1238 = vunpack.c.l.b16 %v365
    %v1239 = vunpack.c.h.b16 %v365
    %v1240 = vunpack.c.l.b16 %v366
    %v1241 = vunpack.c.h.b16 %v366
    %v1242 = vunpack.c.l.b16 %v367
    %v1243 = vunpack.c.h.b16 %v367
    %v1244 = vunpack.c.l.b16 %v368
    %v1245 = vunpack.c.h.b16 %v368
    %v1246 = vunpack.c.l.b16 %v369
    %v1247 = vunpack.c.h.b16 %v369
    %v1248 = vunpack.c.l.b16 %v370
    %v1249 = vunpack.c.h.b16 %v370
    %v1250 = vunpack.c.l.b16 %v371
    %v1251 = vunpack.c.h.b16 %v371
    %v1252 = vunpack.c.l.b16 %v372
    %v1253 = vunpack.c.h.b16 %v372
    %v1254 = vunpack.c.l.b16 %v373
    %v1255 = vunpack.c.h.b16 %v373
    %v1256 = vunpack.c.l.b16 %v374
    %v1257 = vunpack.c.h.b16 %v374
    %v1258 = vunpack.c.l.b16 %v375
    %v1259 = vunpack.c.h.b16 %v375
    %v1260 = vunpack.c.l.b16 %v376
    %v1261 = vunpack.c.h.b16 %v376
    %v1262 = vunpack.c.l.b16 %v377
    %v1263 = vunpack.c.h.b16 %v377
    %v1264 = vunpack.c.l.b16 %v378
    %v1265 = vunpack.c.h.b16 %v378
    %v1266 = vunpack.c.l.b16 %v379
    %v1267 = vunpack.c.h.b16 %v379
    %v1268 = vunpack.c.l.b16 %v380
    %v1269 = vunpack.c.h.b16 %v380
    %v1270 = vunpack.c.l.b16 %v381
    %v1271 = vunpack.c.h.b16 %v381
    %v1272 = vunpack.c.l.b16 %v382
    %v1273 = vunpack.c.h.b16 %v382
    %v1274 = vunpack.c.l.b16 %v383
    %v1275 = vunpack.c.h.b16 %v383
    %v1276 = vunpack.c.l.b16 %v384
    %v1277 = vunpack.c.h.b16 %v384
    %v1278 = vunpack.c.l.b16 %v385
    %v1279 = vunpack.c.h.b16 %v385
    %v1280 = vunpack.c.l.b16 %v386
    %v1281 = vunpack.c.h.b16 %v386
    %v1282 = vunpack.c.l.b16 %v387
    %v1283 = vunpack.c.h.b16 %v387
    %v1284 = vunpack.c.l.b16 %v388
    %v1285 = vunpack.c.h.b16 %v388
    %v1286 = vunpack.c.l.b16 %v389
    %v1287 = vunpack.c.h.b16 %v389
    %v1288 = vunpack.c.l.b16 %v390
    %v1289 = vunpack.c.h.b16 %v390
    %v1290 = vunpack.c.l.b16 %v391
    %v1291 = vunpack.c.h.b16 %v391
    %v1292 = vunpack.c.l.b16 %v392
    %v1293 = vunpack.c.h.b16 %v392
    %v1294 = vunpack.c.l.b16 %v393
    %v1295 = vunpack.c.h.b16 %v393
    %v1296 = vunpack.c.l.b16 %v394
    %v1297 = vunpack.c.h.b16 %v394
    %v1298 = vunpack.c.l.b16 %v395
    %v1299 = vunpack.c.h.b16 %v395
    %v1300 = vunpack.c.l.b16 %v396
    %v1301 = vunpack.c.h.b16 %v396
    %v1302 = vunpack.c.l.b16 %v397
    %v1303 = vunpack.c.h.b16 %v397
    %v1304 = vunpack.c.l.b16 %v398
    %v1305 = vunpack.c.h.b16 %v398
    %v1306 = vunpack.c.l.b16 %v399
    %v1307 = vunpack.c.h.b16 %v399
    %v1308 = vunpack.c.l.b16 %v400
    %v1309 = vunpack.c.h.b16 %v400
    %v1310 = vunpack.c.l.b16 %v401
    %v1311 = vunpack.c.h.b16 %v401
    %v1312 = vunpack.c.l.b16 %v402
    %v1313 = vunpack.c.h.b16 %v402
    %v1314 = vunpack.c.l.b16 %v403
    %v1315 = vunpack.c.h.b16 %v403
    %v1316 = vunpack.c.l.b16 %v404
    %v1317 = vunpack.c.h.b16 %v404
    %v1318 = vunpack.c.l.b16 %v405
    %v1319 = vunpack.c.h.b16 %v405
    %v1320 = vunpack.c.l.b16 %v406
    %v1321 = vunpack.c.h.b16 %v406
    %v1322 = vunpack.c.l.b16 %v407
    %v1323 = vunpack.c.h.b16 %v407
    %v1324 = vunpack.c.l.b16 %v408
    %v1325 = vunpack.c.h.b16 %v408
    %v1326 = vunpack.c.l.b16 %v409
    %v1327 = vunpack.c.h.b16 %v409
    %v1328 = vunpack.c.l.b16 %v410
    %v1329 = vunpack.c.h.b16 %v410
    %v1330 = vunpack.c.l.b16 %v411
    %v1331 = vunpack.c.h.b16 %v411
    %v1332 = vunpack.c.l.b16 %v412
    %v1333 = vunpack.c.h.b16 %v412
    %v1334 = vunpack.c.l.b16 %v413
    %v1335 = vunpack.c.h.b16 %v413
    %v1336 = vunpack.c.l.b16 %v414
    %v1337 = vunpack.c.h.b16 %v414
    %v1338 = vunpack.c.l.b16 %v415
    %v1339 = vunpack.c.h.b16 %v415
    %v1340 = vunpack.c.l.b16 %v416
    %v1341 = vunpack.c.h.b16 %v416
    %v1342 = vunpack.c.l.b16 %v417
    %v1343 = vunpack.c.h.b16 %v417
    %v1344 = vunpack.c.l.b16 %v418
    %v1345 = vunpack.c.h.b16 %v418
    %v1346 = vunpack.c.l.b16 %v419
    %v1347 = vunpack.c.h.b16 %v419
    %v1348 = vunpack.c.l.b16 %v420
    %v1349 = vunpack.c.h.b16 %v420
    %v1350 = vunpack.c.l.b16 %v421
    %v1351 = vunpack.c.h.b16 %v421
    %v1352 = vunpack.c.l.b16 %v422
    %v1353 = vunpack.c.h.b16 %v422
    %v1354 = vunpack.c.l.b16 %v423
    %v1355 = vunpack.c.h.b16 %v423
    %v1356 = vunpack.c.l.b16 %v424
    %v1357 = vunpack.c.h.b16 %v424
    %v1358 = vunpack.c.l.b16 %v425
    %v1359 = vunpack.c.h.b16 %v425
    %v1360 = vunpack.c.l.b16 %v426
    %v1361 = vunpack.c.h.b16 %v426
    %v1362 = vunpack.c.l.b16 %v427
    %v1363 = vunpack.c.h.b16 %v427
    %v1364 = vunpack.c.l.b16 %v428
    %v1365 = vunpack.c.h.b16 %v428
    %v1366 = vunpack.c.l.b16 %v429
    %v1367 = vunpack.c.h.b16 %v429
    %v1368 = vunpack.c.l.b16 %v430
    %v1369 = vunpack.c.h.b16 %v430
    %v1370 = vunpack.c.l.b16 %v431
    %v1371 = vunpack.c.h.b16 %v431
    %v1372 = vunpack.c.l.b16 %v432
    %v1373 = vunpack.c.h.b16 %v432
    %v1374 = vunpack.c.l.b16 %v433
    %v1375 = vunpack.c.h.b16 %v433
    %v1376 = vunpack.c.l.b16 %v434
    %v1377 = vunpack.c.h.b16 %v434
    %v1378 = vunpack.c.l.b16 %v435
    %v1379 = vunpack.c.h.b16 %v435
    %v1380 = vunpack.c.l.b16 %v436
    %v1381 = vunpack.c.h.b16 %v436
    %v1382 = vunpack.c.l.b16 %v437
    %v1383 = vunpack.c.h.b16 %v437
    %v1384 = vunpack.c.l.b16 %v438
    %v1385 = vunpack.c.h.b16 %v438
    %v1386 = vunpack.c.l.b16 %v439
    %v1387 = vunpack.c.h.b16 %v439
    %v1388 = vunpack.c.l.b16 %v440
    %v1389 = vunpack.c.h.b16 %v440
    %v1390 = vunpack.c.l.b16 %v441
    %v1391 = vunpack.c.h.b16 %v441
    %v1392 = vunpack.c.l.b16 %v442
    %v1393 = vunpack.c.h.b16 %v442
    %v1394 = vunpack.c.l.b16 %v443
    %v1395 = vunpack.c.h.b16 %v443
    %v1396 = vunpack.c.l.b16 %v444
    %v1397 = vunpack.c.h.b16 %v444
    %v1398 = vunpack.c.l.b16 %v445
    %v1399 = vunpack.c.h.b16 %v445
    %v1400 = vunpack.c.l.b16 %v446
    %v1401 = vunpack.c.h.b16 %v446
    %v1402 = vunpack.c.l.b16 %v447
    %v1403 = vunpack.c.h.b16 %v447
    %v1404 = vunpack.c.l.b16 %v448
    %v1405 = vunpack.c.h.b16 %v448
    %v1406 = vunpack.c.l.b16 %v449
    %v1407 = vunpack.c.h.b16 %v449
    %v1408 = vunpack.c.l.b16 %v450
    %v1409 = vunpack.c.h.b16 %v450
    %v1410 = vunpack.c.l.b16 %v451
    %v1411 = vunpack.c.h.b16 %v451
    %v1412 = vunpack.c.l.b16 %v452
    %v1413 = vunpack.c.h.b16 %v452
    %v1414 = vunpack.c.l.b16 %v453
    %v1415 = vunpack.c.h.b16 %v453
    %v1416 = vunpack.c.l.b16 %v454
    %v1417 = vunpack.c.h.b16 %v454
    %v1418 = vunpack.c.l.b16 %v455
    %v1419 = vunpack.c.h.b16 %v455
    %v1420 = vunpack.c.l.b16 %v456
    %v1421 = vunpack.c.h.b16 %v456
    %v1422 = vunpack.c.l.b16 %v457
    %v1423 = vunpack.c.h.b16 %v457
    %v1424 = vunpack.c.l.b16 %v458
    %v1425 = vunpack.c.h.b16 %v458
    %v1426 = vunpack.c.l.b16 %v459
    %v1427 = vunpack.c.h.b16 %v459
    %v1428 = vunpack.c.l.b16 %v460
    %v1429 = vunpack.c.h.b16 %v460
    %v1430 = vunpack.c.l.b16 %v461
    %v1431 = vunpack.c.h.b16 %v461
    %v1432 = vunpack.c.l.b16 %v462
    %v1433 = vunpack.c.h.b16 %v462
    %v1434 = vunpack.c.l.b16 %v463
    %v1435 = vunpack.c.h.b16 %v463
    %v1436 = vunpack.c.l.b16 %v464
    %v1437 = vunpack.c.h.b16 %v464
    %v1438 = vunpack.c.l.b16 %v465
    %v1439 = vunpack.c.h.b16 %v465
    %v1440 = vunpack.c.l.b16 %v466
    %v1441 = vunpack.c.h.b16 %v466
    %v1442 = vunpack.c.l.b16 %v467
    %v1443 = vunpack.c.h.b16 %v467
    %v1444 = vunpack.c.l.b16 %v468
    %v1445 = vunpack.c.h.b16 %v468
    %v1446 = vunpack.c.l.b16 %v469
    %v1447 = vunpack.c.h.b16 %v469
    %v1448 = vunpack.c.l.b16 %v470
    %v1449 = vunpack.c.h.b16 %v470
    %v1450 = vunpack.c.l.b16 %v471
    %v1451 = vunpack.c.h.b16 %v471
    %v1452 = vunpack.c.l.b16 %v472
    %v1453 = vunpack.c.h.b16 %v472
    %v1454 = vunpack.c.l.b16 %v473
    %v1455 = vunpack.c.h.b16 %v473
    %v1456 = vpack.c.b16 %v820, %v816
    %v1457 = vpack.c.b16 %v821, %v817
    %v1458 = vpack.c.b16 %v822, %v818
    %v1459 = vpack.c.b16 %v823, %v819
    %v1460 = vpack.c.b16 %v828, %v824
    %v1461 = vpack.c.b16 %v829, %v825
    %v1462 = vpack.c.b16 %v830, %v826
    %v1463 = vpack.c.b16 %v831, %v827
    %v1464 = vpack.c.b16 %v836, %v832
    %v1465 = vpack.c.b16 %v837, %v833
    %v1466 = vpack.c.b16 %v838, %v834
    %v1467 = vpack.c.b16 %v839, %v835
    %v1468 = vpack.c.b16 %v844, %v840
    %v1469 = vpack.c.b16 %v845, %v841
    %v1470 = vpack.c.b16 %v846, %v842
    %v1471 = vpack.c.b16 %v847, %v843
    %v1472 = vpack.c.b16 %v852, %v848
    %v1473 = vpack.c.b16 %v853, %v849
    %v1474 = vpack.c.b16 %v854, %v850
    %v1475 = vpack.c.b16 %v855, %v851
    %v1476 = vpack.c.b16 %v860, %v856
    %v1477 = vpack.c.b16 %v861, %v857
    %v1478 = vpack.c.b16 %v862, %v858
    %v1479 = vpack.c.b16 %v863, %v859
    %v1480 = vpack.c.b16 %v868, %v864
    %v1481 = vpack.c.b16 %v869, %v865
    %v1482 = vpack.c.b16 %v870, %v866
    %v1483 = vpack.c.b16 %v871, %v867
    %v1484 = vpack.c.b16 %v876, %v872
    %v1485 = vpack.c.b16 %v877, %v873
    %v1486 = vpack.c.b16 %v878, %v874
    %v1487 = vpack.c.b16 %v879, %v875
    %v1488 = vpack.c.b16 %v884, %v880
    %v1489 = vpack.c.b16 %v885, %v881
    %v1490 = vpack.c.b16 %v886, %v882
    %v1491 = vpack.c.b16 %v887, %v883
    %v1492 = vpack.c.b16 %v892, %v888
    %v1493 = vpack.c.b16 %v893, %v889
    %v1494 = vpack.c.b16 %v894, %v890
    %v1495 = vpack.c.b16 %v895, %v891
    %v1496 = vpack.c.b16 %v900, %v896
    %v1497 = vpack.c.b16 %v901, %v897
    %v1498 = vpack.c.b16 %v902, %v898
    %v1499 = vpack.c.b16 %v903, %v899
    %v1500 = vpack.c.b16 %v908, %v904
    %v1501 = vpack.c.b16 %v909, %v905
    %v1502 = vpack.c.b16 %v910, %v906
    %v1503 = vpack.c.b16 %v911, %v907
    %v1504 = vpack.c.b16 %v916, %v912
    %v1505 = vpack.c.b16 %v917, %v913
    %v1506 = vpack.c.b16 %v918, %v914
    %v1507 = vpack.c.b16 %v919, %v915
    %v1508 = vpack.c.b16 %v924, %v920
    %v1509 = vpack.c.b16 %v925, %v921
    %v1510 = vpack.c.b16 %v926, %v922
    %v1511 = vpack.c.b16 %v927, %v923
    %v1512 = vpack.c.b16 %v932, %v928
    %v1513 = vpack.c.b16 %v933, %v929
    %v1514 = vpack.c.b16 %v934, %v930
    %v1515 = vpack.c.b16 %v935, %v931
    %v1516 = vpack.c.b16 %v940, %v936
    %v1517 = vpack.c.b16 %v941, %v937
    %v1518 = vpack.c.b16 %v942, %v938
    %v1519 = vpack.c.b16 %v943, %v939
    %v1520 = vpack.c.b16 %v948, %v944
    %v1521 = vpack.c.b16 %v949, %v945
    %v1522 = vpack.c.b16 %v950, %v946
    %v1523 = vpack.c.b16 %v951, %v947
    %v1524 = vpack.c.b16 %v956, %v952
    %v1525 = vpack.c.b16 %v957, %v953
    %v1526 = vpack.c.b16 %v958, %v954
    %v1527 = vpack.c.b16 %v959, %v955
    %v1528 = vpack.c.b16 %v964, %v960
    %v1529 = vpack.c.b16 %v965, %v961
    %v1530 = vpack.c.b16 %v966, %v962
    %v1531 = vpack.c.b16 %v967, %v963
    %v1532 = vpack.c.b16 %v972, %v968
    %v1533 = vpack.c.b16 %v973, %v969
    %v1534 = vpack.c.b16 %v974, %v970
    %v1535 = vpack.c.b16 %v975, %v971
    %v1536 = vpack.c.b16 %v980, %v976
    %v1537 = vpack.c.b16 %v981, %v977
    %v1538 = vpack.c.b16 %v982, %v978
    %v1539 = vpack.c.b16 %v983, %v979
    %v1540 = vpack.c.b16 %v988, %v984
    %v1541 = vpack.c.b16 %v989, %v985
    %v1542 = vpack.c.b16 %v990, %v986
    %v1543 = vpack.c.b16 %v991, %v987
    %v1544 = vpack.c.b16 %v996, %v992
    %v1545 = vpack.c.b16 %v997, %v993
    %v1546 = vpack.c.b16 %v998, %v994
    %v1547 = vpack.c.b16 %v999, %v995
    %v1548 = vpack.c.b16 %v1004, %v1000
    %v1549 = vpack.c.b16 %v1005, %v1001
    %v1550 = vpack.c.b16 %v1006, %v1002
    %v1551 = vpack.c.b16 %v1007, %v1003
    %v1552 = vpack.c.b16 %v1012, %v1008
    %v1553 = vpack.c.b16 %v1013, %v1009
    %v1554 = vpack.c.b16 %v1014, %v1010
    %v1555 = vpack.c.b16 %v1015, %v1011
    %v1556 = vpack.c.b16 %v1020, %v1016
    %v1557 = vpack.c.b16 %v1021, %v1017
    %v1558 = vpack.c.b16 %v1022, %v1018
    %v1559 = vpack.c.b16 %v1023, %v1019
    %v1560 = vpack.c.b16 %v1028, %v1024
    %v1561 = vpack.c.b16 %v1029, %v1025
    %v1562 = vpack.c.b16 %v1030, %v1026
    %v1563 = vpack.c.b16 %v1031, %v1027
    %v1564 = vpack.c.b16 %v1036, %v1032
    %v1565 = vpack.c.b16 %v1037, %v1033
    %v1566 = vpack.c.b16 %v1038, %v1034
    %v1567 = vpack.c.b16 %v1039, %v1035
    %v1568 = vpack.c.b16 %v1044, %v1040
    %v1569 = vpack.c.b16 %v1045, %v1041
    %v1570 = vpack.c.b16 %v1046, %v1042
    %v1571 = vpack.c.b16 %v1047, %v1043
    %v1572 = vpack.c.b16 %v1052, %v1048
    %v1573 = vpack.c.b16 %v1053, %v1049
    %v1574 = vpack.c.b16 %v1054, %v1050
    %v1575 = vpack.c.b16 %v1055, %v1051
    %v1576 = vpack.c.b16 %v1060, %v1056
    %v1577 = vpack.c.b16 %v1061, %v1057
    %v1578 = vpack.c.b16 %v1062, %v1058
    %v1579 = vpack.c.b16 %v1063, %v1059
    %v1580 = vpack.c.b16 %v1068, %v1064
    %v1581 = vpack.c.b16 %v1069, %v1065
    %v1582 = vpack.c.b16 %v1070, %v1066
    %v1583 = vpack.c.b16 %v1071, %v1067
    %v1584 = vpack.c.b16 %v1076, %v1072
    %v1585 = vpack.c.b16 %v1077, %v1073
    %v1586 = vpack.c.b16 %v1078, %v1074
    %v1587 = vpack.c.b16 %v1079, %v1075
    %v1588 = vpack.c.b16 %v1084, %v1080
    %v1589 = vpack.c.b16 %v1085, %v1081
    %v1590 = vpack.c.b16 %v1086, %v1082
    %v1591 = vpack.c.b16 %v1087, %v1083
    %v1592 = vpack.c.b16 %v1092, %v1088
    %v1593 = vpack.c.b16 %v1093, %v1089
    %v1594 = vpack.c.b16 %v1094, %v1090
    %v1595 = vpack.c.b16 %v1095, %v1091
    %v1596 = vpack.c.b16 %v1100, %v1096
    %v1597 = vpack.c.b16 %v1101, %v1097
    %v1598 = vpack.c.b16 %v1102, %v1098
    %v1599 = vpack.c.b16 %v1103, %v1099
    %v1600 = vpack.c.b16 %v1108, %v1104
    %v1601 = vpack.c.b16 %v1109, %v1105
    %v1602 = vpack.c.b16 %v1110, %v1106
    %v1603 = vpack.c.b16 %v1111, %v1107
    %v1604 = vpack.c.b16 %v1116, %v1112
    %v1605 = vpack.c.b16 %v1117, %v1113
    %v1606 = vpack.c.b16 %v1118, %v1114
    %v1607 = vpack.c.b16 %v1119, %v1115
    %v1608 = vpack.c.b16 %v1124, %v1120
    %v1609 = vpack.c.b16 %v1125, %v1121
    %v1610 = vpack.c.b16 %v1126, %v1122
    %v1611 = vpack.c.b16 %v1127, %v1123
    %v1612 = vpack.c.b16 %v1132, %v1128
    %v1613 = vpack.c.b16 %v1133, %v1129
    %v1614 = vpack.c.b16 %v1134, %v1130
    %v1615 = vpack.c.b16 %v1135, %v1131
    %v1616 = vpack.c.b16 %v1140, %v1136
    %v1617 = vpack.c.b16 %v1141, %v1137
    %v1618 = vpack.c.b16 %v1142, %v1138
    %v1619 = vpack.c.b16 %v1143, %v1139
    %v1620 = vpack.c.b16 %v1148, %v1144
    %v1621 = vpack.c.b16 %v1149, %v1145
    %v1622 = vpack.c.b16 %v1150, %v1146
    %v1623 = vpack.c.b16 %v1151, %v1147
    %v1624 = vpack.c.b16 %v1156, %v1152
    %v1625 = vpack.c.b16 %v1157, %v1153
    %v1626 = vpack.c.b16 %v1158, %v1154
    %v1627 = vpack.c.b16 %v1159, %v1155
    %v1628 = vpack.c.b16 %v1164, %v1160
    %v1629 = vpack.c.b16 %v1165, %v1161
    %v1630 = vpack.c.b16 %v1166, %v1162
    %v1631 = vpack.c.b16 %v1167, %v1163
    %v1632 = vpack.c.b16 %v1172, %v1168
    %v1633 = vpack.c.b16 %v1173, %v1169
    %v1634 = vpack.c.b16 %v1174, %v1170
    %v1635 = vpack.c.b16 %v1175, %v1171
    %v1636 = vpack.c.b16 %v1180, %v1176
    %v1637 = vpack.c.b16 %v1181, %v1177
    %v1638 = vpack.c.b16 %v1182, %v1178
    %v1639 = vpack.c.b16 %v1183, %v1179
    %v1640 = vpack.c.b16 %v1188, %v1184
    %v1641 = vpack.c.b16 %v1189, %v1185
    %v1642 = vpack.c.b16 %v1190, %v1186
    %v1643 = vpack.c.b16 %v1191, %v1187
    %v1644 = vpack.c.b16 %v1196, %v1192
    %v1645 = vpack.c.b16 %v1197, %v1193
    %v1646 = vpack.c.b16 %v1198, %v1194
    %v1647 = vpack.c.b16 %v1199, %v1195
    %v1648 = vpack.c.b16 %v1204, %v1200
    %v1649 = vpack.c.b16 %v1205, %v1201
    %v1650 = vpack.c.b16 %v1206, %v1202
    %v1651 = vpack.c.b16 %v1207, %v1203
    %v1652 = vpack.c.b16 %v1212, %v1208
    %v1653 = vpack.c.b16 %v1213, %v1209
    %v1654 = vpack.c.b16 %v1214, %v1210
    %v1655 = vpack.c.b16 %v1215, %v1211
    %v1656 = vpack.c.b16 %v1220, %v1216
    %v1657 = vpack.c.b16 %v1221, %v1217
    %v1658 = vpack.c.b16 %v1222, %v1218
    %v1659 = vpack.c.b16 %v1223, %v1219
    %v1660 = vpack.c.b16 %v1228, %v1224
    %v1661 = vpack.c.b16 %v1229, %v1225
    %v1662 = vpack.c.b16 %v1230, %v1226
    %v1663 = vpack.c.b16 %v1231, %v1227
    %v1664 = vpack.c.b16 %v1236, %v1232
    %v1665 = vpack.c.b16 %v1237, %v1233
    %v1666 = vpack.c.b16 %v1238, %v1234
    %v1667 = vpack.c.b16 %v1239, %v1235
    %v1668 = vpack.c.b16 %v1244, %v1240
    %v1669 = vpack.c.b16 %v1245, %v1241
    %v1670 = vpack.c.b16 %v1246, %v1242
    %v1671 = vpack.c.b16 %v1247, %v1243
    %v1672 = vpack.c.b16 %v1252, %v1248
    %v1673 = vpack.c.b16 %v1253, %v1249
    %v1674 = vpack.c.b16 %v1254, %v1250
    %v1675 = vpack.c.b16 %v1255, %v1251
    %v1676 = vpack.c.b16 %v1260, %v1256
    %v1677 = vpack.c.b16 %v1261, %v1257
    %v1678 = vpack.c.b16 %v1262, %v1258
    %v1679 = vpack.c.b16 %v1263, %v1259
    %v1680 = vpack.c.b16 %v1268, %v1264
    %v1681 = vpack.c.b16 %v1269, %v1265
    %v1682 = vpack.c.b16 %v1270, %v1266
    %v1683 = vpack.c.b16 %v1271, %v1267
    %v1684 = vpack.c.b16 %v1276, %v1272
    %v1685 = vpack.c.b16 %v1277, %v1273
    %v1686 = vpack.c.b16 %v1278, %v1274
    %v1687 = vpack.c.b16 %v1279, %v1275
    %v1688 = vpack.c.b16 %v1284, %v1280
    %v1689 = vpack.c.b16 %v1285, %v1281
    %v1690 = vpack.c.b16 %v1286, %v1282
    %v1691 = vpack.c.b16 %v1287, %v1283
    %v1692 = vpack.c.b16 %v1292, %v1288
    %v1693 = vpack.c.b16 %v1293, %v1289
    %v1694 = vpack.c.b16 %v1294, %v1290
    %v1695 = vpack.c.b16 %v1295, %v1291
    %v1696 = vpack.c.b16 %v1300, %v1296
    %v1697 = vpack.c.b16 %v1301, %v1297
    %v1698 = vpack.c.b16 %v1302, %v1298
    %v1699 = vpack.c.b16 %v1303, %v1299
    %v1700 = vpack.c.b16 %v1308, %v1304
    %v1701 = vpack.c.b16 %v1309, %v1305
    %v1702 = vpack.c.b16 %v1310, %v1306
    %v1703 = vpack.c.b16 %v1311, %v1307
    %v1704 = vpack.c.b16 %v1316, %v1312
    %v1705 = vpack.c.b16 %v1317, %v1313
    %v1706 = vpack.c.b16 %v1318, %v1314
    %v1707 = vpack.c.b16 %v1319, %v1315
    %v1708 = vpack.c.b16 %v1324, %v1320
    %v1709 = vpack.c.b16 %v1325, %v1321
    %v1710 = vpack.c.b16 %v1326, %v1322
    %v1711 = vpack.c.b16 %v1327, %v1323
    %v1712 = vpack.c.b16 %v1332, %v1328
    %v1713 = vpack.c.b16 %v1333, %v1329
    %v1714 = vpack.c.b16 %v1334, %v1330
    %v1715 = vpack.c.b16 %v1335, %v1331
    %v1716 = vpack.c.b16 %v1340, %v1336
    %v1717 = vpack.c.b16 %v1341, %v1337
    %v1718 = vpack.c.b16 %v1342, %v1338
    %v1719 = vpack.c.b16 %v1343, %v1339
    %v1720 = vpack.c.b16 %v1348, %v1344
    %v1721 = vpack.c.b16 %v1349, %v1345
    %v1722 = vpack.c.b16 %v1350, %v1346
    %v1723 = vpack.c.b16 %v1351, %v1347
    %v1724 = vpack.c.b16 %v1356, %v1352
    %v1725 = vpack.c.b16 %v1357, %v1353
    %v1726 = vpack.c.b16 %v1358, %v1354
    %v1727 = vpack.c.b16 %v1359, %v1355
    %v1728 = vpack.c.b16 %v1364, %v1360
    %v1729 = vpack.c.b16 %v1365, %v1361
    %v1730 = vpack.c.b16 %v1366, %v1362
    %v1731 = vpack.c.b16 %v1367, %v1363
    %v1732 = vpack.c.b16 %v1372, %v1368
    %v1733 = vpack.c.b16 %v1373, %v1369
    %v1734 = vpack.c.b16 %v1374, %v1370
    %v1735 = vpack.c.b16 %v1375, %v1371
    %v1736 = vpack.c.b16 %v1380, %v1376
    %v1737 = vpack.c.b16 %v1381, %v1377
    %v1738 = vpack.c.b16 %v1382, %v1378
    %v1739 = vpack.c.b16 %v1383, %v1379
    %v1740 = vpack.c.b16 %v1388, %v1384
    %v1741 = vpack.c.b16 %v1389, %v1385
    %v1742 = vpack.c.b16 %v1390, %v1386
    %v1743 = vpack.c.b16 %v1391, %v1387
    %v1744 = vpack.c.b16 %v1396, %v1392
    %v1745 = vpack.c.b16 %v1397, %v1393
    %v1746 = vpack.c.b16 %v1398, %v1394
    %v1747 = vpack.c.b16 %v1399, %v1395
    %v1748 = vpack.c.b16 %v1404, %v1400
    %v1749 = vpack.c.b16 %v1405, %v1401
    %v1750 = vpack.c.b16 %v1406, %v1402
    %v1751 = vpack.c.b16 %v1407, %v1403
    %v1752 = vpack.c.b16 %v1412, %v1408
    %v1753 = vpack.c.b16 %v1413, %v1409
    %v1754 = vpack.c.b16 %v1414, %v1410
    %v1755 = vpack.c.b16 %v1415, %v1411
    %v1756 = vpack.c.b16 %v1420, %v1416
    %v1757 = vpack.c.b16 %v1421, %v1417
    %v1758 = vpack.c.b16 %v1422, %v1418
    %v1759 = vpack.c.b16 %v1423, %v1419
    %v1760 = vpack.c.b16 %v1428, %v1424
    %v1761 = vpack.c.b16 %v1429, %v1425
    %v1762 = vpack.c.b16 %v1430, %v1426
    %v1763 = vpack.c.b16 %v1431, %v1427
    %v1764 = vpack.c.b16 %v1436, %v1432
    %v1765 = vpack.c.b16 %v1437, %v1433
    %v1766 = vpack.c.b16 %v1438, %v1434
    %v1767 = vpack.c.b16 %v1439, %v1435
    %v1768 = vpack.c.b16 %v1444, %v1440
    %v1769 = vpack.c.b16 %v1445, %v1441
    %v1770 = vpack.c.b16 %v1446, %v1442
    %v1771 = vpack.c.b16 %v1447, %v1443
    %v1772 = vpack.c.b16 %v1452, %v1448
    %v1773 = vpack.c.b16 %v1453, %v1449
    %v1774 = vpack.c.b16 %v1454, %v1450
    %v1775 = vpack.c.b16 %v1455, %v1451
    %2096 = vmatprep.subr.bf16.mxu0 %v1457
    %2097 = vmatpush1.bf16.msra.mxu0 %v1456
    %2098 = vmatprep.subr.bf16.mxu0 %v1461
    %2099 = vmatpush1.bf16.msra.mxu0 %v1460
    %2100 = vmatprep.subr.bf16.mxu0 %v1465
    %2101 = vmatpush1.bf16.msra.mxu0 %v1464
    %2102 = vmatprep.subr.bf16.mxu0 %v1469
    %2103 = vmatpush1.bf16.msra.mxu0 %v1468
    %2104 = vmatprep.subr.bf16.mxu0 %v1473
    %2105 = vmatpush1.bf16.msra.mxu0 %v1472
    %2106 = vmatprep.subr.bf16.mxu0 %v1477
    %2107 = vmatpush1.bf16.msra.mxu0 %v1476
    %2108 = vmatprep.subr.bf16.mxu0 %v1481
    %2109 = vmatpush1.bf16.msra.mxu0 %v1480
    %2110 = vmatprep.subr.bf16.mxu0 %v1485
    %2111 = vmatpush1.bf16.msra.mxu0 %v1484
    %2112 = vmatprep.subr.bf16.mxu0 %v1489
    %2113 = vmatpush1.bf16.msra.mxu0 %v1488
    %2114 = vmatprep.subr.bf16.mxu0 %v1493
    %2115 = vmatpush1.bf16.msra.mxu0 %v1492
    %2116 = vmatprep.subr.bf16.mxu0 %v1497
    %2117 = vmatpush1.bf16.msra.mxu0 %v1496
    %2118 = vmatprep.subr.bf16.mxu0 %v1501
    %2119 = vmatpush1.bf16.msra.mxu0 %v1500
    %2120 = vmatprep.subr.bf16.mxu0 %v1505
    %2121 = vmatpush1.bf16.msra.mxu0 %v1504
    %2122 = vmatprep.subr.bf16.mxu0 %v1509
    %2123 = vmatpush1.bf16.msra.mxu0 %v1508
    %2124 = vmatprep.subr.bf16.mxu0 %v1513
    %2125 = vmatpush1.bf16.msra.mxu0 %v1512
    %2126 = vmatprep.subr.bf16.mxu0 %v1517
    %2127 = vmatpush1.bf16.msra.mxu0 %v1516
    %2128 = vmatprep.mubr.bf16.mxu0 %v145
    %2129 = vmatmul.mubr.bf16.gmra.mrb[0].mxu0 %v144
    %v2130 = vpop.f32.mrb[0].mxu0
    %v2131 = vadd.f32 %v479, %v2130
    %v2132 = vpop.f32.mrb[0].mxu0
    %v2133 = vadd.f32 %v483, %v2132
    %v2134 = vpop.f32.mrb[0].mxu0
    %v2135 = vpop.f32.mrb[0].mxu0
    %2136 = vdwg.mxu0
    %2137 = vmatprep.subr.bf16.mxu0 %v1521
    %2138 = vmatpush1.bf16.msra.mxu0 %v1520
    %2139 = vmatprep.subr.bf16.mxu0 %v1525
    %2140 = vmatpush1.bf16.msra.mxu0 %v1524
    %2141 = vmatprep.subr.bf16.mxu0 %v1529
    %2142 = vmatpush1.bf16.msra.mxu0 %v1528
    %2143 = vmatprep.subr.bf16.mxu0 %v1533
    %2144 = vmatpush1.bf16.msra.mxu0 %v1532
    %2145 = vmatprep.subr.bf16.mxu0 %v1537
    %2146 = vmatpush1.bf16.msra.mxu0 %v1536
    %2147 = vmatprep.subr.bf16.mxu0 %v1541
    %2148 = vmatpush1.bf16.msra.mxu0 %v1540
    %2149 = vmatprep.subr.bf16.mxu0 %v1545
    %2150 = vmatpush1.bf16.msra.mxu0 %v1544
    %2151 = vmatprep.subr.bf16.mxu0 %v1549
    %2152 = vmatpush1.bf16.msra.mxu0 %v1548
    %2153 = vmatprep.subr.bf16.mxu0 %v1553
    %2154 = vmatpush1.bf16.msra.mxu0 %v1552
    %2155 = vmatprep.subr.bf16.mxu0 %v1557
    %2156 = vmatpush1.bf16.msra.mxu0 %v1556
    %2157 = vmatprep.subr.bf16.mxu0 %v1561
    %2158 = vmatpush1.bf16.msra.mxu0 %v1560
    %2159 = vmatprep.subr.bf16.mxu0 %v1565
    %2160 = vmatpush1.bf16.msra.mxu0 %v1564
    %2161 = vmatprep.subr.bf16.mxu0 %v1569
    %2162 = vmatpush1.bf16.msra.mxu0 %v1568
    %2163 = vmatprep.subr.bf16.mxu0 %v1573
    %2164 = vmatpush1.bf16.msra.mxu0 %v1572
    %2165 = vmatprep.subr.bf16.mxu0 %v1577
    %2166 = vmatpush1.bf16.msra.mxu0 %v1576
    %2167 = vmatprep.subr.bf16.mxu0 %v1581
    %2168 = vmatpush1.bf16.msra.mxu0 %v1580
    %2169 = vmatprep.mubr.bf16.mxu0 %v147
    %2170 = vmatmul.mubr.bf16.gmra.mrb[0].mxu0 %v146
    %v2171 = vpop.f32.mrb[0].mxu0
    %v2172 = vadd.f32 %v2131, %v2171
    %v2173 = vpop.f32.mrb[0].mxu0
    %v2174 = vadd.f32 %v2133, %v2173
    %v2175 = vpop.f32.mrb[0].mxu0
    %v2176 = vpop.f32.mrb[0].mxu0
    %2177 = vdwg.mxu0
    %2178 = vmatprep.subr.bf16.mxu0 %v1585
    %2179 = vmatpush1.bf16.msra.mxu0 %v1584
    %2180 = vmatprep.subr.bf16.mxu0 %v1589
    %2181 = vmatpush1.bf16.msra.mxu0 %v1588
    %2182 = vmatprep.subr.bf16.mxu0 %v1593
    %2183 = vmatpush1.bf16.msra.mxu0 %v1592
    %2184 = vmatprep.subr.bf16.mxu0 %v1597
    %2185 = vmatpush1.bf16.msra.mxu0 %v1596
    %2186 = vmatprep.subr.bf16.mxu0 %v1601
    %2187 = vmatpush1.bf16.msra.mxu0 %v1600
    %2188 = vmatprep.subr.bf16.mxu0 %v1605
    %2189 = vmatpush1.bf16.msra.mxu0 %v1604
    %2190 = vmatprep.subr.bf16.mxu0 %v1609
    %2191 = vmatpush1.bf16.msra.mxu0 %v1608
    %2192 = vmatprep.subr.bf16.mxu0 %v1613
    %2193 = vmatpush1.bf16.msra.mxu0 %v1612
    %2194 = vmatprep.subr.bf16.mxu0 %v1617
    %2195 = vmatpush1.bf16.msra.mxu0 %v1616
    %2196 = vmatprep.subr.bf16.mxu0 %v1621
    %2197 = vmatpush1.bf16.msra.mxu0 %v1620
    %2198 = vmatprep.subr.bf16.mxu0 %v1625
    %2199 = vmatpush1.bf16.msra.mxu0 %v1624
    %2200 = vmatprep.subr.bf16.mxu0 %v1629
    %2201 = vmatpush1.bf16.msra.mxu0 %v1628
    %2202 = vmatprep.subr.bf16.mxu0 %v1633
    %2203 = vmatpush1.bf16.msra.mxu0 %v1632
    %2204 = vmatprep.subr.bf16.mxu0 %v1637
    %2205 = vmatpush1.bf16.msra.mxu0 %v1636
    %2206 = vmatprep.subr.bf16.mxu0 %v1641
    %2207 = vmatpush1.bf16.msra.mxu0 %v1640
    %2208 = vmatprep.subr.bf16.mxu0 %v1645
    %2209 = vmatpush1.bf16.msra.mxu0 %v1644
    %2210 = vmatprep.mubr.bf16.mxu0 %v149
    %2211 = vmatmul.mubr.bf16.gmra.mrb[0].mxu0 %v148
    %v2212 = vpop.f32.mrb[0].mxu0
    %v2213 = vadd.f32 %v2172, %v2212
    %v2214 = vpop.f32.mrb[0].mxu0
    %v2215 = vadd.f32 %v2174, %v2214
    %v2216 = vpop.f32.mrb[0].mxu0
    %v2217 = vpop.f32.mrb[0].mxu0
    %2218 = vdwg.mxu0
    %2219 = vmatprep.subr.bf16.mxu0 %v1649
    %2220 = vmatpush1.bf16.msra.mxu0 %v1648
    %2221 = vmatprep.subr.bf16.mxu0 %v1653
    %2222 = vmatpush1.bf16.msra.mxu0 %v1652
    %2223 = vmatprep.subr.bf16.mxu0 %v1657
    %2224 = vmatpush1.bf16.msra.mxu0 %v1656
    %2225 = vmatprep.subr.bf16.mxu0 %v1661
    %2226 = vmatpush1.bf16.msra.mxu0 %v1660
    %2227 = vmatprep.subr.bf16.mxu0 %v1665
    %2228 = vmatpush1.bf16.msra.mxu0 %v1664
    %2229 = vmatprep.subr.bf16.mxu0 %v1669
    %2230 = vmatpush1.bf16.msra.mxu0 %v1668
    %2231 = vmatprep.subr.bf16.mxu0 %v1673
    %2232 = vmatpush1.bf16.msra.mxu0 %v1672
    %2233 = vmatprep.subr.bf16.mxu0 %v1677
    %2234 = vmatpush1.bf16.msra.mxu0 %v1676
    %2235 = vmatprep.subr.bf16.mxu0 %v1681
    %2236 = vmatpush1.bf16.msra.mxu0 %v1680
    %2237 = vmatprep.subr.bf16.mxu0 %v1685
    %2238 = vmatpush1.bf16.msra.mxu0 %v1684
    %2239 = vmatprep.subr.bf16.mxu0 %v1689
    %2240 = vmatpush1.bf16.msra.mxu0 %v1688
    %2241 = vmatprep.subr.bf16.mxu0 %v1693
    %2242 = vmatpush1.bf16.msra.mxu0 %v1692
    %2243 = vmatprep.subr.bf16.mxu0 %v1697
    %2244 = vmatpush1.bf16.msra.mxu0 %v1696
    %2245 = vmatprep.subr.bf16.mxu0 %v1701
    %2246 = vmatpush1.bf16.msra.mxu0 %v1700
    %2247 = vmatprep.subr.bf16.mxu0 %v1705
    %2248 = vmatpush1.bf16.msra.mxu0 %v1704
    %2249 = vmatprep.subr.bf16.mxu0 %v1709
    %2250 = vmatpush1.bf16.msra.mxu0 %v1708
    %2251 = vmatprep.mubr.bf16.mxu0 %v151
    %2252 = vmatmul.mubr.bf16.gmra.mrb[0].mxu0 %v150
    %v2253 = vpop.f32.mrb[0].mxu0
    %v2254 = vadd.f32 %v2213, %v2253
    %v2255 = vpop.f32.mrb[0].mxu0
    %v2256 = vadd.f32 %v2215, %v2255
    %v2257 = vpop.f32.mrb[0].mxu0
    %v2258 = vpop.f32.mrb[0].mxu0
    %2259 = vdwg.mxu0
    %2260 = vmatprep.subr.bf16.mxu0 %v1713
    %2261 = vmatpush1.bf16.msra.mxu0 %v1712
    %2262 = vmatprep.subr.bf16.mxu0 %v1717
    %2263 = vmatpush1.bf16.msra.mxu0 %v1716
    %2264 = vmatprep.subr.bf16.mxu0 %v1721
    %2265 = vmatpush1.bf16.msra.mxu0 %v1720
    %2266 = vmatprep.subr.bf16.mxu0 %v1725
    %2267 = vmatpush1.bf16.msra.mxu0 %v1724
    %2268 = vmatprep.subr.bf16.mxu0 %v1729
    %2269 = vmatpush1.bf16.msra.mxu0 %v1728
    %2270 = vmatprep.subr.bf16.mxu0 %v1733
    %2271 = vmatpush1.bf16.msra.mxu0 %v1732
    %2272 = vmatprep.subr.bf16.mxu0 %v1737
    %2273 = vmatpush1.bf16.msra.mxu0 %v1736
    %2274 = vmatprep.subr.bf16.mxu0 %v1741
    %2275 = vmatpush1.bf16.msra.mxu0 %v1740
    %2276 = vmatprep.subr.bf16.mxu0 %v1745
    %2277 = vmatpush1.bf16.msra.mxu0 %v1744
    %2278 = vmatprep.subr.bf16.mxu0 %v1749
    %2279 = vmatpush1.bf16.msra.mxu0 %v1748
    %2280 = vmatprep.subr.bf16.mxu0 %v1753
    %2281 = vmatpush1.bf16.msra.mxu0 %v1752
    %2282 = vmatprep.subr.bf16.mxu0 %v1757
    %2283 = vmatpush1.bf16.msra.mxu0 %v1756
    %2284 = vmatprep.subr.bf16.mxu0 %v1761
    %2285 = vmatpush1.bf16.msra.mxu0 %v1760
    %2286 = vmatprep.subr.bf16.mxu0 %v1765
    %2287 = vmatpush1.bf16.msra.mxu0 %v1764
    %2288 = vmatprep.subr.bf16.mxu0 %v1769
    %2289 = vmatpush1.bf16.msra.mxu0 %v1768
    %2290 = vmatprep.subr.bf16.mxu0 %v1773
    %2291 = vmatpush1.bf16.msra.mxu0 %v1772
    %2292 = vmatprep.mubr.bf16.mxu0 %v153
    %2293 = vmatmul.mubr.bf16.gmra.mrb[0].mxu0 %v152
    %v2294 = vpop.f32.mrb[0].mxu0
    %v2295 = vadd.f32 %v2254, %v2294
    %v2296 = vpop.f32.mrb[0].mxu0
    %v2297 = vadd.f32 %v2256, %v2296
    %v2298 = vpop.f32.mrb[0].mxu0
    %v2299 = vpop.f32.mrb[0].mxu0
    %2300 = vdwg.mxu0
    %2301 = vmatprep.subr.bf16.mxu0 %v1459
    %2302 = vmatpush1.bf16.msra.mxu0 %v1458
    %2303 = vmatprep.subr.bf16.mxu0 %v1463
    %2304 = vmatpush1.bf16.msra.mxu0 %v1462
    %2305 = vmatprep.subr.bf16.mxu0 %v1467
    %2306 = vmatpush1.bf16.msra.mxu0 %v1466
    %2307 = vmatprep.subr.bf16.mxu0 %v1471
    %2308 = vmatpush1.bf16.msra.mxu0 %v1470
    %2309 = vmatprep.subr.bf16.mxu0 %v1475
    %2310 = vmatpush1.bf16.msra.mxu0 %v1474
    %2311 = vmatprep.subr.bf16.mxu0 %v1479
    %2312 = vmatpush1.bf16.msra.mxu0 %v1478
    %2313 = vmatprep.subr.bf16.mxu0 %v1483
    %2314 = vmatpush1.bf16.msra.mxu0 %v1482
    %2315 = vmatprep.subr.bf16.mxu0 %v1487
    %2316 = vmatpush1.bf16.msra.mxu0 %v1486
    %2317 = vmatprep.subr.bf16.mxu0 %v1491
    %2318 = vmatpush1.bf16.msra.mxu0 %v1490
    %2319 = vmatprep.subr.bf16.mxu0 %v1495
    %2320 = vmatpush1.bf16.msra.mxu0 %v1494
    %2321 = vmatprep.subr.bf16.mxu0 %v1499
    %2322 = vmatpush1.bf16.msra.mxu0 %v1498
    %2323 = vmatprep.subr.bf16.mxu0 %v1503
    %2324 = vmatpush1.bf16.msra.mxu0 %v1502
    %2325 = vmatprep.subr.bf16.mxu0 %v1507
    %2326 = vmatpush1.bf16.msra.mxu0 %v1506
    %2327 = vmatprep.subr.bf16.mxu0 %v1511
    %2328 = vmatpush1.bf16.msra.mxu0 %v1510
    %2329 = vmatprep.subr.bf16.mxu0 %v1515
    %2330 = vmatpush1.bf16.msra.mxu0 %v1514
    %2331 = vmatprep.subr.bf16.mxu0 %v1519
    %2332 = vmatpush1.bf16.msra.mxu0 %v1518
    %2333 = vmatprep.mubr.bf16.mxu0 %v145
    %2334 = vmatmul.mubr.bf16.gmra.mrb[0].mxu0 %v144
    %v2335 = vpop.f32.mrb[0].mxu0
    %v2336 = vadd.f32 %v487, %v2335
    %v2337 = vpop.f32.mrb[0].mxu0
    %v2338 = vadd.f32 %v491, %v2337
    %v2339 = vpop.f32.mrb[0].mxu0
    %v2340 = vpop.f32.mrb[0].mxu0
    %2341 = vdwg.mxu0
    %2342 = vmatprep.subr.bf16.mxu0 %v1523
    %2343 = vmatpush1.bf16.msra.mxu0 %v1522
    %2344 = vmatprep.subr.bf16.mxu0 %v1527
    %2345 = vmatpush1.bf16.msra.mxu0 %v1526
    %2346 = vmatprep.subr.bf16.mxu0 %v1531
    %2347 = vmatpush1.bf16.msra.mxu0 %v1530
    %2348 = vmatprep.subr.bf16.mxu0 %v1535
    %2349 = vmatpush1.bf16.msra.mxu0 %v1534
    %2350 = vmatprep.subr.bf16.mxu0 %v1539
    %2351 = vmatpush1.bf16.msra.mxu0 %v1538
    %2352 = vmatprep.subr.bf16.mxu0 %v1543
    %2353 = vmatpush1.bf16.msra.mxu0 %v1542
    %2354 = vmatprep.subr.bf16.mxu0 %v1547
    %2355 = vmatpush1.bf16.msra.mxu0 %v1546
    %2356 = vmatprep.subr.bf16.mxu0 %v1551
    %2357 = vmatpush1.bf16.msra.mxu0 %v1550
    %2358 = vmatprep.subr.bf16.mxu0 %v1555
    %2359 = vmatpush1.bf16.msra.mxu0 %v1554
    %2360 = vmatprep.subr.bf16.mxu0 %v1559
    %2361 = vmatpush1.bf16.msra.mxu0 %v1558
    %2362 = vmatprep.subr.bf16.mxu0 %v1563
    %2363 = vmatpush1.bf16.msra.mxu0 %v1562
    %2364 = vmatprep.subr.bf16.mxu0 %v1567
    %2365 = vmatpush1.bf16.msra.mxu0 %v1566
    %2366 = vmatprep.subr.bf16.mxu0 %v1571
    %2367 = vmatpush1.bf16.msra.mxu0 %v1570
    %2368 = vmatprep.subr.bf16.mxu0 %v1575
    %2369 = vmatpush1.bf16.msra.mxu0 %v1574
    %2370 = vmatprep.subr.bf16.mxu0 %v1579
    %2371 = vmatpush1.bf16.msra.mxu0 %v1578
    %2372 = vmatprep.subr.bf16.mxu0 %v1583
    %2373 = vmatpush1.bf16.msra.mxu0 %v1582
    %2374 = vmatprep.mubr.bf16.mxu0 %v147
    %2375 = vmatmul.mubr.bf16.gmra.mrb[0].mxu0 %v146
    %v2376 = vpop.f32.mrb[0].mxu0
    %v2377 = vadd.f32 %v2336, %v2376
    %v2378 = vpop.f32.mrb[0].mxu0
    %v2379 = vadd.f32 %v2338, %v2378
    %v2380 = vpop.f32.mrb[0].mxu0
    %v2381 = vpop.f32.mrb[0].mxu0
    %2382 = vdwg.mxu0
    %2383 = vmatprep.subr.bf16.mxu0 %v1587
    %2384 = vmatpush1.bf16.msra.mxu0 %v1586
    %2385 = vmatprep.subr.bf16.mxu0 %v1591
    %2386 = vmatpush1.bf16.msra.mxu0 %v1590
    %2387 = vmatprep.subr.bf16.mxu0 %v1595
    %2388 = vmatpush1.bf16.msra.mxu0 %v1594
    %2389 = vmatprep.subr.bf16.mxu0 %v1599
    %2390 = vmatpush1.bf16.msra.mxu0 %v1598
    %2391 = vmatprep.subr.bf16.mxu0 %v1603
    %2392 = vmatpush1.bf16.msra.mxu0 %v1602
    %2393 = vmatprep.subr.bf16.mxu0 %v1607
    %2394 = vmatpush1.bf16.msra.mxu0 %v1606
    %2395 = vmatprep.subr.bf16.mxu0 %v1611
    %2396 = vmatpush1.bf16.msra.mxu0 %v1610
    %2397 = vmatprep.subr.bf16.mxu0 %v1615
    %2398 = vmatpush1.bf16.msra.mxu0 %v1614
    %2399 = vmatprep.subr.bf16.mxu0 %v1619
    %2400 = vmatpush1.bf16.msra.mxu0 %v1618
    %2401 = vmatprep.subr.bf16.mxu0 %v1623
    %2402 = vmatpush1.bf16.msra.mxu0 %v1622
    %2403 = vmatprep.subr.bf16.mxu0 %v1627
    %2404 = vmatpush1.bf16.msra.mxu0 %v1626
    %2405 = vmatprep.subr.bf16.mxu0 %v1631
    %2406 = vmatpush1.bf16.msra.mxu0 %v1630
    %2407 = vmatprep.subr.bf16.mxu0 %v1635
    %2408 = vmatpush1.bf16.msra.mxu0 %v1634
    %2409 = vmatprep.subr.bf16.mxu0 %v1639
    %2410 = vmatpush1.bf16.msra.mxu0 %v1638
    %2411 = vmatprep.subr.bf16.mxu0 %v1643
    %2412 = vmatpush1.bf16.msra.mxu0 %v1642
    %2413 = vmatprep.subr.bf16.mxu0 %v1647
    %2414 = vmatpush1.bf16.msra.mxu0 %v1646
    %2415 = vmatprep.mubr.bf16.mxu0 %v149
    %2416 = vmatmul.mubr.bf16.gmra.mrb[0].mxu0 %v148
    %v2417 = vpop.f32.mrb[0].mxu0
    %v2418 = vadd.f32 %v2377, %v2417
    %v2419 = vpop.f32.mrb[0].mxu0
    %v2420 = vadd.f32 %v2379, %v2419
    %v2421 = vpop.f32.mrb[0].mxu0
    %v2422 = vpop.f32.mrb[0].mxu0
    %2423 = vdwg.mxu0
    %2424 = vmatprep.subr.bf16.mxu0 %v1651
    %2425 = vmatpush1.bf16.msra.mxu0 %v1650
    %2426 = vmatprep.subr.bf16.mxu0 %v1655
    %2427 = vmatpush1.bf16.msra.mxu0 %v1654
    %2428 = vmatprep.subr.bf16.mxu0 %v1659
    %2429 = vmatpush1.bf16.msra.mxu0 %v1658
    %2430 = vmatprep.subr.bf16.mxu0 %v1663
    %2431 = vmatpush1.bf16.msra.mxu0 %v1662
    %2432 = vmatprep.subr.bf16.mxu0 %v1667
    %2433 = vmatpush1.bf16.msra.mxu0 %v1666
    %2434 = vmatprep.subr.bf16.mxu0 %v1671
    %2435 = vmatpush1.bf16.msra.mxu0 %v1670
    %2436 = vmatprep.subr.bf16.mxu0 %v1675
    %2437 = vmatpush1.bf16.msra.mxu0 %v1674
    %2438 = vmatprep.subr.bf16.mxu0 %v1679
    %2439 = vmatpush1.bf16.msra.mxu0 %v1678
    %2440 = vmatprep.subr.bf16.mxu0 %v1683
    %2441 = vmatpush1.bf16.msra.mxu0 %v1682
    %2442 = vmatprep.subr.bf16.mxu0 %v1687
    %2443 = vmatpush1.bf16.msra.mxu0 %v1686
    %2444 = vmatprep.subr.bf16.mxu0 %v1691
    %2445 = vmatpush1.bf16.msra.mxu0 %v1690
    %2446 = vmatprep.subr.bf16.mxu0 %v1695
    %2447 = vmatpush1.bf16.msra.mxu0 %v1694
    %2448 = vmatprep.subr.bf16.mxu0 %v1699
    %2449 = vmatpush1.bf16.msra.mxu0 %v1698
    %2450 = vmatprep.subr.bf16.mxu0 %v1703
    %2451 = vmatpush1.bf16.msra.mxu0 %v1702
    %2452 = vmatprep.subr.bf16.mxu0 %v1707
    %2453 = vmatpush1.bf16.msra.mxu0 %v1706
    %2454 = vmatprep.subr.bf16.mxu0 %v1711
    %2455 = vmatpush1.bf16.msra.mxu0 %v1710
    %2456 = vmatprep.mubr.bf16.mxu0 %v151
    %2457 = vmatmul.mubr.bf16.gmra.mrb[0].mxu0 %v150
    %v2458 = vpop.f32.mrb[0].mxu0
    %v2459 = vadd.f32 %v2418, %v2458
    %v2460 = vpop.f32.mrb[0].mxu0
    %v2461 = vadd.f32 %v2420, %v2460
    %v2462 = vpop.f32.mrb[0].mxu0
    %v2463 = vpop.f32.mrb[0].mxu0
    %2464 = vdwg.mxu0
    %2465 = vmatprep.subr.bf16.mxu0 %v1715
    %2466 = vmatpush1.bf16.msra.mxu0 %v1714
    %2467 = vmatprep.subr.bf16.mxu0 %v1719
    %2468 = vmatpush1.bf16.msra.mxu0 %v1718
    %2469 = vmatprep.subr.bf16.mxu0 %v1723
    %2470 = vmatpush1.bf16.msra.mxu0 %v1722
    %2471 = vmatprep.subr.bf16.mxu0 %v1727
    %2472 = vmatpush1.bf16.msra.mxu0 %v1726
    %2473 = vmatprep.subr.bf16.mxu0 %v1731
    %2474 = vmatpush1.bf16.msra.mxu0 %v1730
    %2475 = vmatprep.subr.bf16.mxu0 %v1735
    %2476 = vmatpush1.bf16.msra.mxu0 %v1734
    %2477 = vmatprep.subr.bf16.mxu0 %v1739
    %2478 = vmatpush1.bf16.msra.mxu0 %v1738
    %2479 = vmatprep.subr.bf16.mxu0 %v1743
    %2480 = vmatpush1.bf16.msra.mxu0 %v1742
    %2481 = vmatprep.subr.bf16.mxu0 %v1747
    %2482 = vmatpush1.bf16.msra.mxu0 %v1746
    %2483 = vmatprep.subr.bf16.mxu0 %v1751
    %2484 = vmatpush1.bf16.msra.mxu0 %v1750
    %2485 = vmatprep.subr.bf16.mxu0 %v1755
    %2486 = vmatpush1.bf16.msra.mxu0 %v1754
    %2487 = vmatprep.subr.bf16.mxu0 %v1759
    %2488 = vmatpush1.bf16.msra.mxu0 %v1758
    %2489 = vmatprep.subr.bf16.mxu0 %v1763
    %2490 = vmatpush1.bf16.msra.mxu0 %v1762
    %2491 = vmatprep.subr.bf16.mxu0 %v1767
    %2492 = vmatpush1.bf16.msra.mxu0 %v1766
    %2493 = vmatprep.subr.bf16.mxu0 %v1771
    %2494 = vmatpush1.bf16.msra.mxu0 %v1770
    %2495 = vmatprep.subr.bf16.mxu0 %v1775
    %2496 = vmatpush1.bf16.msra.mxu0 %v1774
    %2497 = vmatprep.mubr.bf16.mxu0 %v153
    %2498 = vmatmul.mubr.bf16.gmra.mrb[0].mxu0 %v152
    %v2499 = vpop.f32.mrb[0].mxu0
    %v2500 = vadd.f32 %v2459, %v2499
    %v2501 = vpop.f32.mrb[0].mxu0
    %v2502 = vadd.f32 %v2461, %v2501
    %v2503 = vpop.f32.mrb[0].mxu0
    %v2504 = vpop.f32.mrb[0].mxu0
    %2505 = vdwg.mxu0
    %v2506 = vmax.f32 %v2295, 0.0
    %v2507 = vmax.f32 %v2297, 0.0
    %v2508 = vmax.f32 %v2500, 0.0
    %v2509 = vmax.f32 %v2502, 0.0
    %v2510 = vpack.c.bf16 %v2506, %v2506
    %v2511 = vpack.c.bf16 %v2507, %v2507
    %v2512 = vpack.c.bf16 %v2508, %v2508
    %v2513 = vpack.c.bf16 %v2509, %v2509
    %v2514 = vld [vmem:[%s4] sm:$0xf]
    %v2515 = vld [vmem:[%s4 + $0x4] sm:$0xf]
    %v2516 = vld [vmem:[%s4 + $0x8] sm:$0xf]
    %v2517 = vld [vmem:[%s4 + $0xc] sm:$0xf]
    %v2518 = vld [vmem:[%s4 + $0x10] sm:$0xf]
    %v2519 = vld [vmem:[%s4 + $0x14] sm:$0xf]
    %v2520 = vld [vmem:[%s4 + $0x18] sm:$0xf]
    %v2521 = vld [vmem:[%s4 + $0x1c] sm:$0xf]
    %v2522 = vld [vmem:[%s4 + $0x20] sm:$0xf]
    %v2523 = vld [vmem:[%s4 + $0x24] sm:$0xf]
    %v2524 = vld [vmem:[%s4 + $0x28] sm:$0xf]
    %v2525 = vld [vmem:[%s4 + $0x2c] sm:$0xf]
    %v2526 = vld [vmem:[%s4 + $0x30] sm:$0xf]
    %v2527 = vld [vmem:[%s4 + $0x34] sm:$0xf]
    %v2528 = vld [vmem:[%s4 + $0x38] sm:$0xf]
    %v2529 = vld [vmem:[%s4 + $0x3c] sm:$0xf]
    %v2530 = vld [vmem:[%s4 + $0x40] sm:$0xf]
    %v2531 = vld [vmem:[%s4 + $0x44] sm:$0xf]
    %v2532 = vld [vmem:[%s4 + $0x48] sm:$0xf]
    %v2533 = vld [vmem:[%s4 + $0x4c] sm:$0xf]
    %v2534 = vld [vmem:[%s4 + $0x50] sm:$0xf]
    %v2535 = vld [vmem:[%s4 + $0x54] sm:$0xf]
    %v2536 = vld [vmem:[%s4 + $0x58] sm:$0xf]
    %v2537 = vld [vmem:[%s4 + $0x5c] sm:$0xf]
    %v2538 = vld [vmem:[%s4 + $0x60] sm:$0xf]
    %v2539 = vld [vmem:[%s4 + $0x64] sm:$0xf]
    %v2540 = vld [vmem:[%s4 + $0x68] sm:$0xf]
    %v2541 = vld [vmem:[%s4 + $0x6c] sm:$0xf]
    %v2542 = vld [vmem:[%s4 + $0x70] sm:$0xf]
    %v2543 = vld [vmem:[%s4 + $0x74] sm:$0xf]
    %v2544 = vld [vmem:[%s4 + $0x78] sm:$0xf]
    %v2545 = vld [vmem:[%s4 + $0x7c] sm:$0xf]
    %v2546 = vld [vmem:[%s4 + $0x80] sm:$0xf]
    %v2547 = vld [vmem:[%s4 + $0x84] sm:$0xf]
    %v2548 = vld [vmem:[%s4 + $0x88] sm:$0xf]
    %v2549 = vld [vmem:[%s4 + $0x8c] sm:$0xf]
    %v2550 = vld [vmem:[%s4 + $0x90] sm:$0xf]
    %v2551 = vld [vmem:[%s4 + $0x94] sm:$0xf]
    %v2552 = vld [vmem:[%s4 + $0x98] sm:$0xf]
    %v2553 = vld [vmem:[%s4 + $0x9c] sm:$0xf]
    %v2554 = vld [vmem:[%s4 + $0xa0] sm:$0xf]
    %v2555 = vld [vmem:[%s4 + $0xa4] sm:$0xf]
    %v2556 = vld [vmem:[%s4 + $0xa8] sm:$0xf]
    %v2557 = vld [vmem:[%s4 + $0xac] sm:$0xf]
    %v2558 = vld [vmem:[%s4 + $0xb0] sm:$0xf]
    %v2559 = vld [vmem:[%s4 + $0xb4] sm:$0xf]
    %v2560 = vld [vmem:[%s4 + $0xb8] sm:$0xf]
    %v2561 = vld [vmem:[%s4 + $0xbc] sm:$0xf]
    %v2562 = vld [vmem:[%s4 + $0xc0] sm:$0xf]
    %v2563 = vld [vmem:[%s4 + $0xc4] sm:$0xf]
    %v2564 = vld [vmem:[%s4 + $0xc8] sm:$0xf]
    %v2565 = vld [vmem:[%s4 + $0xcc] sm:$0xf]
    %v2566 = vld [vmem:[%s4 + $0xd0] sm:$0xf]
    %v2567 = vld [vmem:[%s4 + $0xd4] sm:$0xf]
    %v2568 = vld [vmem:[%s4 + $0xd8] sm:$0xf]
    %v2569 = vld [vmem:[%s4 + $0xdc] sm:$0xf]
    %v2570 = vld [vmem:[%s4 + $0xe0] sm:$0xf]
    %v2571 = vld [vmem:[%s4 + $0xe4] sm:$0xf]
    %v2572 = vld [vmem:[%s4 + $0xe8] sm:$0xf]
    %v2573 = vld [vmem:[%s4 + $0xec] sm:$0xf]
    %v2574 = vld [vmem:[%s4 + $0xf0] sm:$0xf]
    %v2575 = vld [vmem:[%s4 + $0xf4] sm:$0xf]
    %v2576 = vld [vmem:[%s4 + $0xf8] sm:$0xf]
    %v2577 = vld [vmem:[%s4 + $0xfc] sm:$0xf]
    %v2578 = vld [vmem:[#allocation10] sm:$0x1]
    %v2580 = vlaneseq
    %v2581 = vshrl.u32 %v2580, 7
    %v2582 = vsub.s32 0, %v2581
    %v2583 = vrot.slane %v2578, %v2582
    %v2649 = vunpack.c.l.b16 %v2514
    %v2650 = vunpack.c.l.b16 %v2515
    %v2651 = vunpack.c.l.b16 %v2516
    %v2652 = vunpack.c.l.b16 %v2517
    %v2653 = vunpack.c.l.b16 %v2518
    %v2654 = vunpack.c.l.b16 %v2519
    %v2655 = vunpack.c.l.b16 %v2520
    %v2656 = vunpack.c.l.b16 %v2521
    %v2657 = vunpack.c.l.b16 %v2522
    %v2658 = vunpack.c.l.b16 %v2523
    %v2659 = vunpack.c.l.b16 %v2524
    %v2660 = vunpack.c.l.b16 %v2525
    %v2661 = vunpack.c.l.b16 %v2526
    %v2662 = vunpack.c.l.b16 %v2527
    %v2663 = vunpack.c.l.b16 %v2528
    %v2664 = vunpack.c.l.b16 %v2529
    %v2665 = vunpack.c.l.b16 %v2530
    %v2666 = vunpack.c.l.b16 %v2531
    %v2667 = vunpack.c.l.b16 %v2532
    %v2668 = vunpack.c.l.b16 %v2533
    %v2669 = vunpack.c.l.b16 %v2534
    %v2670 = vunpack.c.l.b16 %v2535
    %v2671 = vunpack.c.l.b16 %v2536
    %v2672 = vunpack.c.l.b16 %v2537
    %v2673 = vunpack.c.l.b16 %v2538
    %v2674 = vunpack.c.l.b16 %v2539
    %v2675 = vunpack.c.l.b16 %v2540
    %v2676 = vunpack.c.l.b16 %v2541
    %v2677 = vunpack.c.l.b16 %v2542
    %v2678 = vunpack.c.l.b16 %v2543
    %v2679 = vunpack.c.l.b16 %v2544
    %v2680 = vunpack.c.l.b16 %v2545
    %v2681 = vunpack.c.l.b16 %v2546
    %v2682 = vunpack.c.l.b16 %v2547
    %v2683 = vunpack.c.l.b16 %v2548
    %v2684 = vunpack.c.l.b16 %v2549
    %v2685 = vunpack.c.l.b16 %v2550
    %v2686 = vunpack.c.l.b16 %v2551
    %v2687 = vunpack.c.l.b16 %v2552
    %v2688 = vunpack.c.l.b16 %v2553
    %v2689 = vunpack.c.l.b16 %v2554
    %v2690 = vunpack.c.l.b16 %v2555
    %v2691 = vunpack.c.l.b16 %v2556
    %v2692 = vunpack.c.l.b16 %v2557
    %v2693 = vunpack.c.l.b16 %v2558
    %v2694 = vunpack.c.l.b16 %v2559
    %v2695 = vunpack.c.l.b16 %v2560
    %v2696 = vunpack.c.l.b16 %v2561
    %v2697 = vunpack.c.l.b16 %v2562
    %v2698 = vunpack.c.l.b16 %v2563
    %v2699 = vunpack.c.l.b16 %v2564
    %v2700 = vunpack.c.l.b16 %v2565
    %v2701 = vunpack.c.l.b16 %v2566
    %v2702 = vunpack.c.l.b16 %v2567
    %v2703 = vunpack.c.l.b16 %v2568
    %v2704 = vunpack.c.l.b16 %v2569
    %v2705 = vunpack.c.l.b16 %v2570
    %v2706 = vunpack.c.l.b16 %v2571
    %v2707 = vunpack.c.l.b16 %v2572
    %v2708 = vunpack.c.l.b16 %v2573
    %v2709 = vunpack.c.l.b16 %v2574
    %v2710 = vunpack.c.l.b16 %v2575
    %v2711 = vunpack.c.l.b16 %v2576
    %v2712 = vunpack.c.l.b16 %v2577
    %v2713 = vpack.c.b16 %v2650, %v2649
    %v2714 = vpack.c.b16 %v2652, %v2651
    %v2715 = vpack.c.b16 %v2654, %v2653
    %v2716 = vpack.c.b16 %v2656, %v2655
    %v2717 = vpack.c.b16 %v2658, %v2657
    %v2718 = vpack.c.b16 %v2660, %v2659
    %v2719 = vpack.c.b16 %v2662, %v2661
    %v2720 = vpack.c.b16 %v2664, %v2663
    %v2721 = vpack.c.b16 %v2666, %v2665
    %v2722 = vpack.c.b16 %v2668, %v2667
    %v2723 = vpack.c.b16 %v2670, %v2669
    %v2724 = vpack.c.b16 %v2672, %v2671
    %v2725 = vpack.c.b16 %v2674, %v2673
    %v2726 = vpack.c.b16 %v2676, %v2675
    %v2727 = vpack.c.b16 %v2678, %v2677
    %v2728 = vpack.c.b16 %v2680, %v2679
    %v2729 = vpack.c.b16 %v2682, %v2681
    %v2730 = vpack.c.b16 %v2684, %v2683
    %v2731 = vpack.c.b16 %v2686, %v2685
    %v2732 = vpack.c.b16 %v2688, %v2687
    %v2733 = vpack.c.b16 %v2690, %v2689
    %v2734 = vpack.c.b16 %v2692, %v2691
    %v2735 = vpack.c.b16 %v2694, %v2693
    %v2736 = vpack.c.b16 %v2696, %v2695
    %v2737 = vpack.c.b16 %v2698, %v2697
    %v2738 = vpack.c.b16 %v2700, %v2699
    %v2739 = vpack.c.b16 %v2702, %v2701
    %v2740 = vpack.c.b16 %v2704, %v2703
    %v2741 = vpack.c.b16 %v2706, %v2705
    %v2742 = vpack.c.b16 %v2708, %v2707
    %v2743 = vpack.c.b16 %v2710, %v2709
    %v2744 = vpack.c.b16 %v2712, %v2711
    %2777 = vmatprep.subr.bf16.mxu0 0
    %2778 = vmatpush1.bf16.msra.mxu0 %v2713
    %2779 = vmatprep.subr.bf16.mxu0 0
    %2780 = vmatpush1.bf16.msra.mxu0 %v2714
    %2781 = vmatprep.subr.bf16.mxu0 0
    %2782 = vmatpush1.bf16.msra.mxu0 %v2715
    %2783 = vmatprep.subr.bf16.mxu0 0
    %2784 = vmatpush1.bf16.msra.mxu0 %v2716
    %2785 = vmatprep.subr.bf16.mxu0 0
    %2786 = vmatpush1.bf16.msra.mxu0 %v2717
    %2787 = vmatprep.subr.bf16.mxu0 0
    %2788 = vmatpush1.bf16.msra.mxu0 %v2718
    %2789 = vmatprep.subr.bf16.mxu0 0
    %2790 = vmatpush1.bf16.msra.mxu0 %v2719
    %2791 = vmatprep.subr.bf16.mxu0 0
    %2792 = vmatpush1.bf16.msra.mxu0 %v2720
    %2793 = vmatprep.subr.bf16.mxu0 0
    %2794 = vmatpush1.bf16.msra.mxu0 %v2721
    %2795 = vmatprep.subr.bf16.mxu0 0
    %2796 = vmatpush1.bf16.msra.mxu0 %v2722
    %2797 = vmatprep.subr.bf16.mxu0 0
    %2798 = vmatpush1.bf16.msra.mxu0 %v2723
    %2799 = vmatprep.subr.bf16.mxu0 0
    %2800 = vmatpush1.bf16.msra.mxu0 %v2724
    %2801 = vmatprep.subr.bf16.mxu0 0
    %2802 = vmatpush1.bf16.msra.mxu0 %v2725
    %2803 = vmatprep.subr.bf16.mxu0 0
    %2804 = vmatpush1.bf16.msra.mxu0 %v2726
    %2805 = vmatprep.subr.bf16.mxu0 0
    %2806 = vmatpush1.bf16.msra.mxu0 %v2727
    %2807 = vmatprep.subr.bf16.mxu0 0
    %2808 = vmatpush1.bf16.msra.mxu0 %v2728
    %2809 = vmatprep.mubr.bf16.mxu0 %v2511
    %2810 = vmatmul.mubr.bf16.gmra.mrb[0].mxu0 %v2510
    %v2811 = vpop.f32.mrb[0].mxu0
    %v2812 = vadd.f32 %v2583, %v2811
    %v2813 = vpop.f32.mrb[0].mxu0
    %v2814 = vpop.f32.mrb[0].mxu0
    %v2815 = vpop.f32.mrb[0].mxu0
    %2816 = vdwg.mxu0
    %2817 = vmatprep.subr.bf16.mxu0 0
    %2818 = vmatpush1.bf16.msra.mxu0 %v2729
    %2819 = vmatprep.subr.bf16.mxu0 0
    %2820 = vmatpush1.bf16.msra.mxu0 %v2730
    %2821 = vmatprep.subr.bf16.mxu0 0
    %2822 = vmatpush1.bf16.msra.mxu0 %v2731
    %2823 = vmatprep.subr.bf16.mxu0 0
    %2824 = vmatpush1.bf16.msra.mxu0 %v2732
    %2825 = vmatprep.subr.bf16.mxu0 0
    %2826 = vmatpush1.bf16.msra.mxu0 %v2733
    %2827 = vmatprep.subr.bf16.mxu0 0
    %2828 = vmatpush1.bf16.msra.mxu0 %v2734
    %2829 = vmatprep.subr.bf16.mxu0 0
    %2830 = vmatpush1.bf16.msra.mxu0 %v2735
    %2831 = vmatprep.subr.bf16.mxu0 0
    %2832 = vmatpush1.bf16.msra.mxu0 %v2736
    %2833 = vmatprep.subr.bf16.mxu0 0
    %2834 = vmatpush1.bf16.msra.mxu0 %v2737
    %2835 = vmatprep.subr.bf16.mxu0 0
    %2836 = vmatpush1.bf16.msra.mxu0 %v2738
    %2837 = vmatprep.subr.bf16.mxu0 0
    %2838 = vmatpush1.bf16.msra.mxu0 %v2739
    %2839 = vmatprep.subr.bf16.mxu0 0
    %2840 = vmatpush1.bf16.msra.mxu0 %v2740
    %2841 = vmatprep.subr.bf16.mxu0 0
    %2842 = vmatpush1.bf16.msra.mxu0 %v2741
    %2843 = vmatprep.subr.bf16.mxu0 0
    %2844 = vmatpush1.bf16.msra.mxu0 %v2742
    %2845 = vmatprep.subr.bf16.mxu0 0
    %2846 = vmatpush1.bf16.msra.mxu0 %v2743
    %2847 = vmatprep.subr.bf16.mxu0 0
    %2848 = vmatpush1.bf16.msra.mxu0 %v2744
    %2849 = vmatprep.mubr.bf16.mxu0 %v2513
    %2850 = vmatmul.mubr.bf16.gmra.mrb[0].mxu0 %v2512
    %v2851 = vpop.f32.mrb[0].mxu0
    %v2852 = vadd.f32 %v2812, %v2851
    %v2853 = vpop.f32.mrb[0].mxu0
    %v2854 = vpop.f32.mrb[0].mxu0
    %v2855 = vpop.f32.mrb[0].mxu0
    %2856 = vdwg.mxu0
    %v2857 = vld [vmem:[#allocation5] sm:$0xff]
    %v2858 = vpack.c.bf16 %v2857, %v2857
    %v2859 = vld [vmem:[#allocation11] sm:$0xff]
    %v2860 = vld [vmem:[#allocation11 + $0x8] sm:$0xff]
    %v2861 = vld [vmem:[#allocation11 + $0x10] sm:$0xff]
    %v2862 = vld [vmem:[#allocation11 + $0x18] sm:$0xff]
    %v2863 = vld [vmem:[#allocation11 + $0x20] sm:$0xff]
    %v2864 = vld [vmem:[#allocation11 + $0x28] sm:$0xff]
    %v2865 = vld [vmem:[#allocation11 + $0x30] sm:$0xff]
    %v2866 = vld [vmem:[#allocation11 + $0x38] sm:$0xff]
    %v2867 = vld [vmem:[#allocation11 + $0x40] sm:$0xff]
    %v2868 = vld [vmem:[#allocation11 + $0x48] sm:$0xff]
    %v2869 = vld [vmem:[#allocation11 + $0x50] sm:$0xff]
    %v2870 = vld [vmem:[#allocation11 + $0x58] sm:$0xff]
    %v2871 = vld [vmem:[#allocation11 + $0x60] sm:$0xff]
    %v2872 = vld [vmem:[#allocation11 + $0x68] sm:$0xff]
    %v2873 = vld [vmem:[#allocation11 + $0x70] sm:$0xff]
    %v2874 = vld [vmem:[#allocation11 + $0x78] sm:$0xff]
    %v2875 = vld [vmem:[#allocation13] sm:$0x3]
    %v2877 = vlaneseq
    %v2878 = vshrl.u32 %v2877, 7
    %v2879 = vsub.s32 0, %v2878
    %v2880 = vrot.slane %v2875, %v2879
    %v2881 = vlaneseq
    %v2882 = vshrl.u32 %v2881, 7
    %v2883 = vsub.s32 1, %v2882
    %v2884 = vrot.slane %v2875, %v2883
    %v2903 = vunpack.c.l.b16 %v2859
    %v2904 = vunpack.c.h.b16 %v2859
    %v2905 = vunpack.c.l.b16 %v2860
    %v2906 = vunpack.c.h.b16 %v2860
    %v2907 = vunpack.c.l.b16 %v2861
    %v2908 = vunpack.c.h.b16 %v2861
    %v2909 = vunpack.c.l.b16 %v2862
    %v2910 = vunpack.c.h.b16 %v2862
    %v2911 = vunpack.c.l.b16 %v2863
    %v2912 = vunpack.c.h.b16 %v2863
    %v2913 = vunpack.c.l.b16 %v2864
    %v2914 = vunpack.c.h.b16 %v2864
    %v2915 = vunpack.c.l.b16 %v2865
    %v2916 = vunpack.c.h.b16 %v2865
    %v2917 = vunpack.c.l.b16 %v2866
    %v2918 = vunpack.c.h.b16 %v2866
    %v2919 = vunpack.c.l.b16 %v2867
    %v2920 = vunpack.c.h.b16 %v2867
    %v2921 = vunpack.c.l.b16 %v2868
    %v2922 = vunpack.c.h.b16 %v2868
    %v2923 = vunpack.c.l.b16 %v2869
    %v2924 = vunpack.c.h.b16 %v2869
    %v2925 = vunpack.c.l.b16 %v2870
    %v2926 = vunpack.c.h.b16 %v2870
    %v2927 = vunpack.c.l.b16 %v2871
    %v2928 = vunpack.c.h.b16 %v2871
    %v2929 = vunpack.c.l.b16 %v2872
    %v2930 = vunpack.c.h.b16 %v2872
    %v2931 = vunpack.c.l.b16 %v2873
    %v2932 = vunpack.c.h.b16 %v2873
    %v2933 = vunpack.c.l.b16 %v2874
    %v2934 = vunpack.c.h.b16 %v2874
    %v2935 = vpack.c.b16 %v2905, %v2903
    %v2936 = vpack.c.b16 %v2906, %v2904
    %v2937 = vpack.c.b16 %v2909, %v2907
    %v2938 = vpack.c.b16 %v2910, %v2908
    %v2939 = vpack.c.b16 %v2913, %v2911
    %v2940 = vpack.c.b16 %v2914, %v2912
    %v2941 = vpack.c.b16 %v2917, %v2915
    %v2942 = vpack.c.b16 %v2918, %v2916
    %v2943 = vpack.c.b16 %v2921, %v2919
    %v2944 = vpack.c.b16 %v2922, %v2920
    %v2945 = vpack.c.b16 %v2925, %v2923
    %v2946 = vpack.c.b16 %v2926, %v2924
    %v2947 = vpack.c.b16 %v2929, %v2927
    %v2948 = vpack.c.b16 %v2930, %v2928
    %v2949 = vpack.c.b16 %v2933, %v2931
    %v2950 = vpack.c.b16 %v2934, %v2932
    %2967 = vmatprep.subr.bf16.mxu0 %v2936
    %2968 = vmatpush1.bf16.msra.mxu0 %v2935
    %2969 = vmatprep.subr.bf16.mxu0 %v2938
    %2970 = vmatpush1.bf16.msra.mxu0 %v2937
    %2971 = vmatprep.subr.bf16.mxu0 %v2940
    %2972 = vmatpush1.bf16.msra.mxu0 %v2939
    %2973 = vmatprep.subr.bf16.mxu0 %v2942
    %2974 = vmatpush1.bf16.msra.mxu0 %v2941
    %2975 = vmatprep.subr.bf16.mxu0 %v2944
    %2976 = vmatpush1.bf16.msra.mxu0 %v2943
    %2977 = vmatprep.subr.bf16.mxu0 %v2946
    %2978 = vmatpush1.bf16.msra.mxu0 %v2945
    %2979 = vmatprep.subr.bf16.mxu0 %v2948
    %2980 = vmatpush1.bf16.msra.mxu0 %v2947
    %2981 = vmatprep.subr.bf16.mxu0 %v2950
    %2982 = vmatpush1.bf16.msra.mxu0 %v2949
    %2983 = vmatprep.subr.bf16.mxu0 0
    %2984 = vmatpush1.bf16.msra.mxu0 0
    %2985 = vmatprep.subr.bf16.mxu0 0
    %2986 = vmatpush1.bf16.msra.mxu0 0
    %2987 = vmatprep.subr.bf16.mxu0 0
    %2988 = vmatpush1.bf16.msra.mxu0 0
    %2989 = vmatprep.subr.bf16.mxu0 0
    %2990 = vmatpush1.bf16.msra.mxu0 0
    %2991 = vmatprep.subr.bf16.mxu0 0
    %2992 = vmatpush1.bf16.msra.mxu0 0
    %2993 = vmatprep.subr.bf16.mxu0 0
    %2994 = vmatpush1.bf16.msra.mxu0 0
    %2995 = vmatprep.subr.bf16.mxu0 0
    %2996 = vmatpush1.bf16.msra.mxu0 0
    %2997 = vmatprep.subr.bf16.mxu0 0
    %2998 = vmatpush1.bf16.msra.mxu0 0
    %2999 = vmatprep.mubr.bf16.mxu0 0
    %3000 = vmatmul.mubr.bf16.gmra.mrb[0].mxu0 %v2858
    %v3001 = vpop.f32.mrb[0].mxu0
    %v3002 = vadd.f32 %v2880, %v3001
    %v3003 = vpop.f32.mrb[0].mxu0
    %v3004 = vadd.f32 %v2884, %v3003
    %v3005 = vpop.f32.mrb[0].mxu0
    %v3006 = vpop.f32.mrb[0].mxu0
    %3007 = vdwg.mxu0
    %v3008 = vmax.f32 %v3002, 0.0
    %v3009 = vmax.f32 %v3004, 0.0
    %v3010 = vpack.c.bf16 %v3008, %v3008
    %v3011 = vpack.c.bf16 %v3009, %v3009
    %v3012 = vld [vmem:[%s8] sm:$0xf]
    %v3013 = vld [vmem:[%s8 + $0x4] sm:$0xf]
    %v3014 = vld [vmem:[%s8 + $0x8] sm:$0xf]
    %v3015 = vld [vmem:[%s8 + $0xc] sm:$0xf]
    %v3016 = vld [vmem:[%s8 + $0x10] sm:$0xf]
    %v3017 = vld [vmem:[%s8 + $0x14] sm:$0xf]
    %v3018 = vld [vmem:[%s8 + $0x18] sm:$0xf]
    %v3019 = vld [vmem:[%s8 + $0x1c] sm:$0xf]
    %v3020 = vld [vmem:[%s8 + $0x20] sm:$0xf]
    %v3021 = vld [vmem:[%s8 + $0x24] sm:$0xf]
    %v3022 = vld [vmem:[%s8 + $0x28] sm:$0xf]
    %v3023 = vld [vmem:[%s8 + $0x2c] sm:$0xf]
    %v3024 = vld [vmem:[%s8 + $0x30] sm:$0xf]
    %v3025 = vld [vmem:[%s8 + $0x34] sm:$0xf]
    %v3026 = vld [vmem:[%s8 + $0x38] sm:$0xf]
    %v3027 = vld [vmem:[%s8 + $0x3c] sm:$0xf]
    %v3028 = vld [vmem:[%s8 + $0x40] sm:$0xf]
    %v3029 = vld [vmem:[%s8 + $0x44] sm:$0xf]
    %v3030 = vld [vmem:[%s8 + $0x48] sm:$0xf]
    %v3031 = vld [vmem:[%s8 + $0x4c] sm:$0xf]
    %v3032 = vld [vmem:[%s8 + $0x50] sm:$0xf]
    %v3033 = vld [vmem:[%s8 + $0x54] sm:$0xf]
    %v3034 = vld [vmem:[%s8 + $0x58] sm:$0xf]
    %v3035 = vld [vmem:[%s8 + $0x5c] sm:$0xf]
    %v3036 = vld [vmem:[%s8 + $0x60] sm:$0xf]
    %v3037 = vld [vmem:[%s8 + $0x64] sm:$0xf]
    %v3038 = vld [vmem:[%s8 + $0x68] sm:$0xf]
    %v3039 = vld [vmem:[%s8 + $0x6c] sm:$0xf]
    %v3040 = vld [vmem:[%s8 + $0x70] sm:$0xf]
    %v3041 = vld [vmem:[%s8 + $0x74] sm:$0xf]
    %v3042 = vld [vmem:[%s8 + $0x78] sm:$0xf]
    %v3043 = vld [vmem:[%s8 + $0x7c] sm:$0xf]
    %v3044 = vld [vmem:[#allocation14] sm:$0x1]
    %v3046 = vlaneseq
    %v3047 = vshrl.u32 %v3046, 7
    %v3048 = vsub.s32 0, %v3047
    %v3049 = vrot.slane %v3044, %v3048
    %v3083 = vunpack.c.l.b16 %v3012
    %v3084 = vunpack.c.l.b16 %v3013
    %v3085 = vunpack.c.l.b16 %v3014
    %v3086 = vunpack.c.l.b16 %v3015
    %v3087 = vunpack.c.l.b16 %v3016
    %v3088 = vunpack.c.l.b16 %v3017
    %v3089 = vunpack.c.l.b16 %v3018
    %v3090 = vunpack.c.l.b16 %v3019
    %v3091 = vunpack.c.l.b16 %v3020
    %v3092 = vunpack.c.l.b16 %v3021
    %v3093 = vunpack.c.l.b16 %v3022
    %v3094 = vunpack.c.l.b16 %v3023
    %v3095 = vunpack.c.l.b16 %v3024
    %v3096 = vunpack.c.l.b16 %v3025
    %v3097 = vunpack.c.l.b16 %v3026
    %v3098 = vunpack.c.l.b16 %v3027
    %v3099 = vunpack.c.l.b16 %v3028
    %v3100 = vunpack.c.l.b16 %v3029
    %v3101 = vunpack.c.l.b16 %v3030
    %v3102 = vunpack.c.l.b16 %v3031
    %v3103 = vunpack.c.l.b16 %v3032
    %v3104 = vunpack.c.l.b16 %v3033
    %v3105 = vunpack.c.l.b16 %v3034
    %v3106 = vunpack.c.l.b16 %v3035
    %v3107 = vunpack.c.l.b16 %v3036
    %v3108 = vunpack.c.l.b16 %v3037
    %v3109 = vunpack.c.l.b16 %v3038
    %v3110 = vunpack.c.l.b16 %v3039
    %v3111 = vunpack.c.l.b16 %v3040
    %v3112 = vunpack.c.l.b16 %v3041
    %v3113 = vunpack.c.l.b16 %v3042
    %v3114 = vunpack.c.l.b16 %v3043
    %v3115 = vpack.c.b16 %v3084, %v3083
    %v3116 = vpack.c.b16 %v3086, %v3085
    %v3117 = vpack.c.b16 %v3088, %v3087
    %v3118 = vpack.c.b16 %v3090, %v3089
    %v3119 = vpack.c.b16 %v3092, %v3091
    %v3120 = vpack.c.b16 %v3094, %v3093
    %v3121 = vpack.c.b16 %v3096, %v3095
    %v3122 = vpack.c.b16 %v3098, %v3097
    %v3123 = vpack.c.b16 %v3100, %v3099
    %v3124 = vpack.c.b16 %v3102, %v3101
    %v3125 = vpack.c.b16 %v3104, %v3103
    %v3126 = vpack.c.b16 %v3106, %v3105
    %v3127 = vpack.c.b16 %v3108, %v3107
    %v3128 = vpack.c.b16 %v3110, %v3109
    %v3129 = vpack.c.b16 %v3112, %v3111
    %v3130 = vpack.c.b16 %v3114, %v3113
    %3147 = vmatprep.subr.bf16.mxu0 0
    %3148 = vmatpush1.bf16.msra.mxu0 %v3115
    %3149 = vmatprep.subr.bf16.mxu0 0
    %3150 = vmatpush1.bf16.msra.mxu0 %v3116
    %3151 = vmatprep.subr.bf16.mxu0 0
    %3152 = vmatpush1.bf16.msra.mxu0 %v3117
    %3153 = vmatprep.subr.bf16.mxu0 0
    %3154 = vmatpush1.bf16.msra.mxu0 %v3118
    %3155 = vmatprep.subr.bf16.mxu0 0
    %3156 = vmatpush1.bf16.msra.mxu0 %v3119
    %3157 = vmatprep.subr.bf16.mxu0 0
    %3158 = vmatpush1.bf16.msra.mxu0 %v3120
    %3159 = vmatprep.subr.bf16.mxu0 0
    %3160 = vmatpush1.bf16.msra.mxu0 %v3121
    %3161 = vmatprep.subr.bf16.mxu0 0
    %3162 = vmatpush1.bf16.msra.mxu0 %v3122
    %3163 = vmatprep.subr.bf16.mxu0 0
    %3164 = vmatpush1.bf16.msra.mxu0 %v3123
    %3165 = vmatprep.subr.bf16.mxu0 0
    %3166 = vmatpush1.bf16.msra.mxu0 %v3124
    %3167 = vmatprep.subr.bf16.mxu0 0
    %3168 = vmatpush1.bf16.msra.mxu0 %v3125
    %3169 = vmatprep.subr.bf16.mxu0 0
    %3170 = vmatpush1.bf16.msra.mxu0 %v3126
    %3171 = vmatprep.subr.bf16.mxu0 0
    %3172 = vmatpush1.bf16.msra.mxu0 %v3127
    %3173 = vmatprep.subr.bf16.mxu0 0
    %3174 = vmatpush1.bf16.msra.mxu0 %v3128
    %3175 = vmatprep.subr.bf16.mxu0 0
    %3176 = vmatpush1.bf16.msra.mxu0 %v3129
    %3177 = vmatprep.subr.bf16.mxu0 0
    %3178 = vmatpush1.bf16.msra.mxu0 %v3130
    %3179 = vmatprep.mubr.bf16.mxu0 %v3011
    %3180 = vmatmul.mubr.bf16.gmra.mrb[0].mxu0 %v3010
    %v3181 = vpop.f32.mrb[0].mxu0
    %v3182 = vadd.f32 %v3049, %v3181
    %v3183 = vpop.f32.mrb[0].mxu0
    %v3184 = vpop.f32.mrb[0].mxu0
    %v3185 = vpop.f32.mrb[0].mxu0
    %3186 = vdwg.mxu0
    %3188 = vrot.lane.b32.xlu0 %v3182, 64
    %v3189 = vpop.permute.xlu0 %3188
    %vm3191 = vcmask 523264
    %v3192 = vsel %vm3191, %v2852, %v3189
    %3193 = vst [vmem:[#allocation16] sm:$0xff] %v3192
    // Predicated region
    $region74: #{tpu_custom_call.1} parent=1 // pred_check
      _
    $region75: #{tpu_custom_call.1} parent=1 // pred_check_branch
      %3195 = sbr.rel (0) target = $region77
    $region76: #{tpu_custom_call.1} parent=1 // pred_region
      %s3197 = ssub.s32 128, 128
      %3198 = vsyncadd [#allocation4], %s3197
      %s3200 = sshll.u32 [#allocation16], 4
      %s3201 = int_to_ptr.vmem [resolvable:$true] %s3200
      %3203 = dma.vmem_to_hbm [thread:$0]  %s3201, 128, %s10, [#allocation4]
    $region77: #{tpu_custom_call.1} parent=1 // pred_fallthru
      _
    // Predicated region
    $region78: #{tpu_custom_call.1} parent=1 // pred_check
      _
    $region79: #{tpu_custom_call.1} parent=1 // pred_check_branch
      %3205 = sbr.rel (0) target = $region81
    $region80: #{tpu_custom_call.1} parent=1 // pred_region
      %3206 = dma.done [#allocation4], 128
    $region81: #{tpu_custom_call.1} parent=1 // pred_fallthru
      _
    %3207 = vsyncpa [#allocation3], 1
    %3208 = vsyncpa [#allocation6], 1
    %3209 = vsyncpa [#allocation9], 1
    %3210 = vsyncpa [#allocation12], 1
    %3211 = vsyncpa [#allocation15], 1
    %3212 = vsyncpa [#allocation4], 1

</llo_original>
